<compile_context>
chip_gen: v5e
topology: v5e:2x2
jax: 0.10.0
libtpu: 0.0.40
codegen_flags: <defaults>
</compile_context>

<pallas_src>
import math

import jax
import jax.numpy as jnp
from jax.experimental import pallas as pl
from jax.experimental.pallas import tpu as pltpu


# ---------------------------------------------------------------------------
# Hardware query / tile sizing
# ---------------------------------------------------------------------------

def _tpu_vmem_and_cores():
    """(per-core VMEM capacity bytes, tensorcores per chip), with safe fallbacks."""
    cap = 64 * 1024 * 1024          # conservative default (v7x per-TC VMEM)
    cores = 1
    try:
        info = pltpu.get_tpu_info()
        cap = int(getattr(info, "vmem_capacity_bytes", cap))
        cores = int(getattr(info, "num_cores",
                            getattr(info, "tensorcores_per_chip", 1)))
    except Exception:
        pass
    if cores < 1:
        cores = 1
    # v7x heuristic: 64 MiB per-TC VMEM <=> 2 TensorCores share the chip.
    if cores == 1 and cap <= 80 * 1024 * 1024:
        cores = 2
    return cap, cores


def _vmem_plan():
    cap, cores = _tpu_vmem_and_cores()
    vmem_limit = int(cap * 3 // 4)                       # ~48 MiB v7x / ~96 MiB v5e,v6e
    # Budget (in elements) for ONE streamed bf16 weight tile, double-buffered,
    # leaving ~40% of the scoped limit for resident inputs / outputs / bookkeeping.
    weight_elem_budget = (vmem_limit * 6 // 10) // (2 * 2)
    min_par_tiles = 2 if cores >= 2 else 1               # keep both v7x TCs busy
    return vmem_limit, weight_elem_budget, min_par_tiles


def _largest_divisor(d, cap, aligns=(128,)):
    """Largest t <= cap with d % t == 0 and t % align == 0 (first align that
    yields one); falls back to the full dimension d (always a legal block dim)."""
    cap = max(1, min(cap, d))
    for align in aligns:
        t = (cap // align) * align
        while t >= align:
            if d % t == 0:
                return t
            t -= align
    # TODO(synk): for very large D/HW not divisible by 8/128 this full-dim
    # fallback can exceed the VMEM budget; pad D at init or mask an edge tile.
    return d


def _fused_tiles(D, HW, C, weight_elem_budget, min_p_tiles):
    """(tk, tp) for the (C, D, HW) V^T weight streamed as (C, tk, tp) bf16 tiles."""
    p_cap = HW // min_p_tiles if min_p_tiles > 1 else HW
    tp = _largest_divisor(HW, min(max(p_cap, 128), 2048), aligns=(128,))
    tk_cap = max(128, weight_elem_budget // max(C * tp, 1))
    tk = _largest_divisor(D, min(tk_cap, 4096), aligns=(128, 8))
    return tk, tp


def _matmul_tiles(K, N, weight_elem_budget, min_n_tiles):
    """(tk, tn) for a (K, N) weight streamed as (tk, tn) bf16 tiles."""
    n_cap = N // min_n_tiles if min_n_tiles > 1 else N
    tn = _largest_divisor(N, min(max(n_cap, 128), 2048), aligns=(128,))
    tk_cap = max(128, weight_elem_budget // max(tn, 1))
    tk = _largest_divisor(K, min(tk_cap, 4096), aligns=(128, 8))
    return tk, tn


# ---------------------------------------------------------------------------
# Kernel A: fused   x @ V^T  ->  pointwise unet MLP  ->  eps (bf16, pixel basis)
# ---------------------------------------------------------------------------

def _v_mlp_kernel(x_ref, vt_ref, w1t_ref, b1_ref, w2t_ref, b2_ref, o_ref, acc_ref):
    # Grid = (HW-tiles j [parallel], K-tiles kk [arbitrary, reduction last]).
    #   x_ref  : (B, D)       f32  resident (K sliced in-kernel)
    #   vt_ref : (C, tk, tp)  bf16 streamed V^T tile (channel-major output cols)
    #   o_ref  : (B, C, tp)   bf16 eps tile in pixel basis
    #   acc_ref: (C, B, tp)   f32  x_normal accumulator
    kk = pl.program_id(1)

    @pl.when(kk == 0)
    def _():
        acc_ref[...] = jnp.zeros_like(acc_ref)

    C, tk, _ = vt_ref.shape
    k0 = pl.multiple_of(kk * tk, tk)
    xk = x_ref[:, pl.ds(k0, tk)].astype(jnp.bfloat16)          # (B, tk)
    for c in range(C):                                         # C static & tiny
        acc_ref[c] += jnp.dot(xk, vt_ref[c],
                              preferred_element_type=jnp.float32)

    @pl.when(kk == pl.num_programs(1) - 1)
    def _():
        xn = acc_ref[...]                                      # (C, B, tp) f32
        nb = xn.shape[1]
        for b in range(nb):                                    # B static & tiny
            xb = xn[:, b, :]                                   # (C, tp)
            h = jnp.dot(w1t_ref[...], xb,
                        preferred_element_type=jnp.float32) + b1_ref[...]
            h = h * jax.nn.sigmoid(h)                          # SiLU (f32 VPU/EUP)
            eps = jnp.dot(w2t_ref[...], h,
                          preferred_element_type=jnp.float32) + b2_ref[...]
            o_ref[b] = eps.astype(o_ref.dtype)                 # lane-dense bf16 store


def pallas_v_and_unet(x, vtC, w1t, b1_eff, w2t, b2):
    """x: (B, D) f32 in SVD basis; vtC: (C, D, HW) bf16. Returns eps (B, C, HW) bf16."""
    B, D = x.shape
    C, D2, HW = vtC.shape
    assert D == D2
    Hd = w1t.shape[0]

    vmem_limit, w_elems, min_par = _vmem_plan()
    tk, tp = _fused_tiles(D, HW, C, w_elems, min_par)
    grid = (HW // tp, D // tk)

    cost = pl.CostEstimate(
        flops=2 * B * D * D + 4 * B * Hd * C * HW,
        transcendentals=B * Hd * HW,
        bytes_accessed=(x.size * 4 + vtC.size * 2 + B * C * HW * 2
                        + (w1t.size + b1_eff.size + w2t.size + b2.size) * 4),
    )

    return pl.pallas_call(
        _v_mlp_kernel,
        out_shape=jax.ShapeDtypeStruct((B, C, HW), jnp.bfloat16),
        grid_spec=pltpu.PrefetchScalarGridSpec(
            num_scalar_prefetch=0,
            grid=grid,
            in_specs=[
                pl.BlockSpec((B, D), lambda j, k: (0, 0)),          # x resident
                pl.BlockSpec((C, tk, tp), lambda j, k: (0, k, j)),  # streamed V^T
                pl.BlockSpec((Hd, C), lambda j, k: (0, 0)),
                pl.BlockSpec((Hd, 1), lambda j, k: (0, 0)),
                pl.BlockSpec((C, Hd), lambda j, k: (0, 0)),
                pl.BlockSpec((C, 1), lambda j, k: (0, 0)),
            ],
            out_specs=pl.BlockSpec((B, C, tp), lambda j, k: (0, 0, j)),
            scratch_shapes=[pltpu.VMEM((C, B, tp), jnp.float32)],
        ),
        compiler_params=pltpu.CompilerParams(
            dimension_semantics=("parallel", "arbitrary"),
            vmem_limit_bytes=vmem_limit,
        ),
        cost_estimate=cost,
    )(x, vtC, w1t, b1_eff, w2t, b2)


# ---------------------------------------------------------------------------
# Kernel B: eps_flat @ V  (bf16 MXU, f32 accumulation directly in the output)
# ---------------------------------------------------------------------------

def _matmul_acc_kernel(x_ref, w_ref, o_ref):
    # Grid = (N-tiles j [parallel], K-tiles kk [arbitrary, reduction last]).
    kk = pl.program_id(1)

    @pl.when(kk == 0)
    def _():
        o_ref[...] = jnp.zeros_like(o_ref)

    tk = w_ref.shape[0]
    k0 = pl.multiple_of(kk * tk, tk)
    o_ref[...] += jnp.dot(x_ref[:, pl.ds(k0, tk)], w_ref[...],
                          preferred_element_type=jnp.float32)


def pallas_matmul(x, w):
    """(B, K) bf16 @ (K, N) bf16 -> (B, N) f32; x resident, weight streamed."""
    B, K = x.shape
    K2, N = w.shape
    assert K == K2

    vmem_limit, w_elems, min_par = _vmem_plan()
    tk, tn = _matmul_tiles(K, N, w_elems, min_par)
    grid = (N // tn, K // tk)

    cost = pl.CostEstimate(
        flops=2 * B * K * N,
        transcendentals=0,
        bytes_accessed=x.size * x.dtype.itemsize + w.size * 2 + B * N * 4,
    )

    return pl.pallas_call(
        _matmul_acc_kernel,
        out_shape=jax.ShapeDtypeStruct((B, N), jnp.float32),
        grid_spec=pltpu.PrefetchScalarGridSpec(
            num_scalar_prefetch=0,
            grid=grid,
            in_specs=[
                pl.BlockSpec((B, K), lambda j, k: (0, 0)),      # x resident
                pl.BlockSpec((tk, tn), lambda j, k: (k, j)),    # streamed weight
            ],
            out_specs=pl.BlockSpec((B, tn), lambda j, k: (0, j)),
        ),
        compiler_params=pltpu.CompilerParams(
            dimension_semantics=("parallel", "arbitrary"),
            vmem_limit_bytes=vmem_limit,
        ),
        cost_estimate=cost,
    )(x, w)


# ---------------------------------------------------------------------------
# Glue (parameter setup, timestep embedding)
# ---------------------------------------------------------------------------

def timestep_embedding(t, emb_dim):
    """Sinusoidal timestep embedding (1, emb_dim); emb_dim must be even."""
    half = emb_dim // 2
    freqs = jnp.exp(-math.log(10000.0) * jnp.arange(half, dtype=jnp.float32) / half)
    args = jnp.asarray(t, dtype=jnp.float32) * freqs
    return jnp.concatenate([jnp.sin(args), jnp.cos(args)])[None, :]


def init_params(key, dim, hidden=32, temb_dim=32):
    C, Himg, Wimg = dim
    HW = Himg * Wimg
    D = C * HW
    k_v, k_w1, k_w2, k_wt = jax.random.split(key, 4)
    # Orthogonal V (right singular vectors of H = U S V^T).
    V_mat, _ = jnp.linalg.qr(jax.random.normal(k_v, (D, D), dtype=jnp.float32))
    w1 = jax.random.normal(k_w1, (C, hidden), dtype=jnp.float32) * 0.2
    w2 = jax.random.normal(k_w2, (hidden, C), dtype=jnp.float32) * 0.2
    wt = jax.random.normal(k_wt, (temb_dim, hidden), dtype=jnp.float32) * 0.2
    Vt = V_mat.T                                           # V(x)  = x @ V^T
    return dict(
        # V^T with its output (pixel-basis) axis split channel-major -> (C, D, HW),
        # so one HW lane-tile carries all channels of those pixels (fused MLP).
        VtC_bf16=Vt.reshape(D, C, HW).transpose(1, 0, 2).astype(jnp.bfloat16),
        V_bf16=V_mat.astype(jnp.bfloat16),                 # Vt(e) = e @ V
        # TODO(synk): storing both orientations doubles HBM for V; for very large D
        # on v5e keep only V^T and contract the second matmul with swapped dims.
        w1t=w1.T,                                          # (hidden, C)
        b1=jnp.zeros((hidden, 1), jnp.float32),
        w2t=w2.T,                                          # (C, hidden)
        b2=jnp.zeros((C, 1), jnp.float32),
        wt=wt,
        dim=dim, hidden=hidden, temb_dim=temb_dim,
    )


def epsilon_net_svd_forward(params, x, t):
    """x: (B, D) vector in SVD basis; t: scalar timestep. Returns (B, D) f32."""
    C, Himg, Wimg = params["dim"]
    HW = Himg * Wimg
    D = C * HW
    B = x.shape[0]
    hidden = params["hidden"]

    # unet timestep conditioning folded into the first pointwise bias.
    temb = (timestep_embedding(t, params["temb_dim"]) @ params["wt"]).reshape(hidden, 1)
    b1_eff = params["b1"] + temb

    # --- H_funcs.V(x) + unet pointwise MLP, fused in one Pallas kernel ---
    eps_chw = pallas_v_and_unet(x, params["VtC_bf16"], params["w1t"], b1_eff,
                                params["w2t"], params["b2"])     # (B, C, HW) bf16

    # --- H_funcs.Vt(eps, for_H=False): pixel basis -> SVD basis ---
    # TODO(synk): for_H-dependent singular-value masking of some H_funcs
    # implementations is not modeled; only the orthogonal V^T transform is kept.
    eps_flat = eps_chw.reshape(B, D)            # channel-major NCHW flatten (free)
    return pallas_matmul(eps_flat, params["V_bf16"])             # (B, D) f32


# ---------------------------------------------------------------------------
# Reference (plain JAX, same bf16 rounding points) for a sanity check
# ---------------------------------------------------------------------------

def reference_forward(params, x, t):
    C, Himg, Wimg = params["dim"]
    HW = Himg * Wimg
    D = C * HW
    B = x.shape[0]
    hidden = params["hidden"]

    Vt = params["VtC_bf16"].astype(jnp.float32).transpose(1, 0, 2).reshape(D, D)
    V = params["V_bf16"].astype(jnp.float32)
    xb = x.astype(jnp.bfloat16).astype(jnp.float32)

    x_normal = xb @ Vt
    x_chw = x_normal.reshape(B, C, HW)
    temb = (timestep_embedding(t, params["temb_dim"]) @ params["wt"]).reshape(hidden, 1)
    b1_eff = params["b1"] + temb
    h = jnp.einsum("hc,bcp->bhp", params["w1t"], x_chw) + b1_eff[None]
    h = h * jax.nn.sigmoid(h)
    eps = jnp.einsum("ch,bhp->bcp", params["w2t"], h) + params["b2"][None]
    eps_flat = eps.reshape(B, D).astype(jnp.bfloat16).astype(jnp.float32)
    return eps_flat @ V


if __name__ == "__main__":
    key = jax.random.PRNGKey(0)
    k_params, k_x = jax.random.split(key)

    dim = (4, 16, 16)                    # (C, H, W) -> D = 1024, HW = 256
    B = 2
    D = dim[0] * dim[1] * dim[2]

    params = init_params(k_params, dim)
    x = jax.random.normal(k_x, (B, D), dtype=jnp.float32)
    t = 10

    out = jax.block_until_ready(epsilon_net_svd_forward(params, x, t))
    ref = reference_forward(params, x, t)

    assert out.shape == (B, D)
    assert jnp.allclose(out, ref, atol=2e-3, rtol=2e-3), float(jnp.max(jnp.abs(out - ref)))

    print("KERNEL_OK")
</pallas_src>

<mosaic_0001>
module attributes {stable_mosaic.version = 11 : i64} {
  func.func @_v_mlp_kernel(%arg0: i32, %arg1: i32, %arg2: memref<2x1024xf32, #tpu.memory_space<vmem>>, %arg3: memref<4x1024x128xbf16, #tpu.memory_space<vmem>>, %arg4: memref<32x4xf32, #tpu.memory_space<vmem>>, %arg5: memref<32x1xf32, #tpu.memory_space<vmem>>, %arg6: memref<4x32xf32, #tpu.memory_space<vmem>>, %arg7: memref<4x1xf32, #tpu.memory_space<vmem>>, %arg8: memref<2x4x128xbf16, #tpu.memory_space<vmem>>, %arg9: memref<4x2x128xf32, #tpu.memory_space<vmem>>) attributes {dimension_semantics = [#tpu.dimension_semantics<parallel>, #tpu.dimension_semantics<arbitrary>], iteration_bounds = array<i64: 2, 1>, scalar_prefetch = 0 : i64, scratch_operands = 1 : i64, tpu.core_type = #tpu.core_type<tc>, window_params = [{pipeline_mode = #tpu.pipeline_mode<synchronous>, transform_indices = @transform_0, window_bounds = array<i64: 2, 1024>}, {transform_indices = @transform_1, window_bounds = array<i64: 4, 1024, 128>}, {pipeline_mode = #tpu.pipeline_mode<synchronous>, transform_indices = @transform_2, window_bounds = array<i64: 32, 4>}, {pipeline_mode = #tpu.pipeline_mode<synchronous>, transform_indices = @transform_3, window_bounds = array<i64: 32, 1>}, {pipeline_mode = #tpu.pipeline_mode<synchronous>, transform_indices = @transform_4, window_bounds = array<i64: 4, 32>}, {pipeline_mode = #tpu.pipeline_mode<synchronous>, transform_indices = @transform_5, window_bounds = array<i64: 4, 1>}, {transform_indices = @transform_6, window_bounds = array<i64: 2, 4, 128>}]} {
    %c0_i32 = arith.constant 0 : i32
    %0 = arith.cmpi eq, %arg1, %c0_i32 : i32
    %1 = arith.extui %0 : i1 to i32
    %c0_i32_0 = arith.constant 0 : i32
    %2 = arith.cmpi ne, %1, %c0_i32_0 : i32
    scf.if %2 {
      %cst_39 = arith.constant 0.000000e+00 : f32
      %47 = vector.broadcast %cst_39 : f32 to vector<4x2x128xf32>
      %c0_40 = arith.constant 0 : index
      %c0_41 = arith.constant 0 : index
      %c0_42 = arith.constant 0 : index
      %48 = vector.load %arg9[%c0_40, %c0_41, %c0_42] : memref<4x2x128xf32, #tpu.memory_space<vmem>>, vector<4x2x128xf32>
      tpu.vector_store %arg9[%c0_40, %c0_41, %c0_42], %47 {strides = array<i32>} : memref<4x2x128xf32, #tpu.memory_space<vmem>>, vector<4x2x128xf32>,
    } else {
    }
    %c1024_i32 = arith.constant 1024 : i32
    %3 = arith.muli %arg1, %c1024_i32 : i32
    %4 = tpu.assume_multiple %3, 1024 : i32
    %c0 = arith.constant 0 : index
    %5 = arith.index_cast %4 : i32 to index
    %6 = vector.load %arg2[%c0, %5] : memref<2x1024xf32, #tpu.memory_space<vmem>>, vector<2x1024xf32>
    %7 = arith.truncf %6 : vector<2x1024xf32> to vector<2x1024xbf16>
    %c0_1 = arith.constant 0 : index
    %c0_2 = arith.constant 0 : index
    %c0_3 = arith.constant 0 : index
    %8 = vector.load %arg9[%c0_1, %c0_2, %c0_3] : memref<4x2x128xf32, #tpu.memory_space<vmem>>, vector<1x2x128xf32>
    %9 = vector.shape_cast %8 : vector<1x2x128xf32> to vector<2x128xf32>
    %c0_4 = arith.constant 0 : index
    %c0_5 = arith.constant 0 : index
    %c0_6 = arith.constant 0 : index
    %10 = vector.load %arg3[%c0_4, %c0_5, %c0_6] : memref<4x1024x128xbf16, #tpu.memory_space<vmem>>, vector<1x1024x128xbf16>
    %11 = vector.shape_cast %10 : vector<1x1024x128xbf16> to vector<1024x128xbf16>
    %cst = arith.constant dense<0.000000e+00> : vector<2x128xf32>
    %12 = tpu.matmul %7, %11, %cst {dimension_numbers = #tpu.dot_dimension_numbers<[1], [0], [0], [1], [0, 0, 1, 1], [], []>} : vector<2x1024xbf16>, vector<1024x128xbf16>, vector<2x128xf32> -> vector<2x128xf32>
    %13 = arith.addf %9, %12 : vector<2x128xf32>
    %c0_7 = arith.constant 0 : index
    %c0_8 = arith.constant 0 : index
    %c0_9 = arith.constant 0 : index
    %14 = vector.load %arg9[%c0_7, %c0_8, %c0_9] : memref<4x2x128xf32, #tpu.memory_space<vmem>>, vector<1x2x128xf32>
    %15 = vector.shape_cast %14 : vector<1x2x128xf32> to vector<2x128xf32>
    %16 = vector.shape_cast %13 : vector<2x128xf32> to vector<1x2x128xf32>
    tpu.vector_store %arg9[%c0_7, %c0_8, %c0_9], %16 {strides = array<i32>} : memref<4x2x128xf32, #tpu.memory_space<vmem>>, vector<1x2x128xf32>,
    %c1 = arith.constant 1 : index
    %c0_10 = arith.constant 0 : index
    %c0_11 = arith.constant 0 : index
    %17 = vector.load %arg9[%c1, %c0_10, %c0_11] : memref<4x2x128xf32, #tpu.memory_space<vmem>>, vector<1x2x128xf32>
    %18 = vector.shape_cast %17 : vector<1x2x128xf32> to vector<2x128xf32>
    %c1_12 = arith.constant 1 : index
    %c0_13 = arith.constant 0 : index
    %c0_14 = arith.constant 0 : index
    %19 = vector.load %arg3[%c1_12, %c0_13, %c0_14] : memref<4x1024x128xbf16, #tpu.memory_space<vmem>>, vector<1x1024x128xbf16>
    %20 = vector.shape_cast %19 : vector<1x1024x128xbf16> to vector<1024x128xbf16>
    %cst_15 = arith.constant dense<0.000000e+00> : vector<2x128xf32>
    %21 = tpu.matmul %7, %20, %cst_15 {dimension_numbers = #tpu.dot_dimension_numbers<[1], [0], [0], [1], [0, 0, 1, 1], [], []>} : vector<2x1024xbf16>, vector<1024x128xbf16>, vector<2x128xf32> -> vector<2x128xf32>
    %22 = arith.addf %18, %21 : vector<2x128xf32>
    %c1_16 = arith.constant 1 : index
    %c0_17 = arith.constant 0 : index
    %c0_18 = arith.constant 0 : index
    %23 = vector.load %arg9[%c1_16, %c0_17, %c0_18] : memref<4x2x128xf32, #tpu.memory_space<vmem>>, vector<1x2x128xf32>
    %24 = vector.shape_cast %23 : vector<1x2x128xf32> to vector<2x128xf32>
    %25 = vector.shape_cast %22 : vector<2x128xf32> to vector<1x2x128xf32>
    tpu.vector_store %arg9[%c1_16, %c0_17, %c0_18], %25 {strides = array<i32>} : memref<4x2x128xf32, #tpu.memory_space<vmem>>, vector<1x2x128xf32>,
    %c2 = arith.constant 2 : index
    %c0_19 = arith.constant 0 : index
    %c0_20 = arith.constant 0 : index
    %26 = vector.load %arg9[%c2, %c0_19, %c0_20] : memref<4x2x128xf32, #tpu.memory_space<vmem>>, vector<1x2x128xf32>
    %27 = vector.shape_cast %26 : vector<1x2x128xf32> to vector<2x128xf32>
    %c2_21 = arith.constant 2 : index
    %c0_22 = arith.constant 0 : index
    %c0_23 = arith.constant 0 : index
    %28 = vector.load %arg3[%c2_21, %c0_22, %c0_23] : memref<4x1024x128xbf16, #tpu.memory_space<vmem>>, vector<1x1024x128xbf16>
    %29 = vector.shape_cast %28 : vector<1x1024x128xbf16> to vector<1024x128xbf16>
    %cst_24 = arith.constant dense<0.000000e+00> : vector<2x128xf32>
    %30 = tpu.matmul %7, %29, %cst_24 {dimension_numbers = #tpu.dot_dimension_numbers<[1], [0], [0], [1], [0, 0, 1, 1], [], []>} : vector<2x1024xbf16>, vector<1024x128xbf16>, vector<2x128xf32> -> vector<2x128xf32>
    %31 = arith.addf %27, %30 : vector<2x128xf32>
    %c2_25 = arith.constant 2 : index
    %c0_26 = arith.constant 0 : index
    %c0_27 = arith.constant 0 : index
    %32 = vector.load %arg9[%c2_25, %c0_26, %c0_27] : memref<4x2x128xf32, #tpu.memory_space<vmem>>, vector<1x2x128xf32>
    %33 = vector.shape_cast %32 : vector<1x2x128xf32> to vector<2x128xf32>
    %34 = vector.shape_cast %31 : vector<2x128xf32> to vector<1x2x128xf32>
    tpu.vector_store %arg9[%c2_25, %c0_26, %c0_27], %34 {strides = array<i32>} : memref<4x2x128xf32, #tpu.memory_space<vmem>>, vector<1x2x128xf32>,
    %c3 = arith.constant 3 : index
    %c0_28 = arith.constant 0 : index
    %c0_29 = arith.constant 0 : index
    %35 = vector.load %arg9[%c3, %c0_28, %c0_29] : memref<4x2x128xf32, #tpu.memory_space<vmem>>, vector<1x2x128xf32>
    %36 = vector.shape_cast %35 : vector<1x2x128xf32> to vector<2x128xf32>
    %c3_30 = arith.constant 3 : index
    %c0_31 = arith.constant 0 : index
    %c0_32 = arith.constant 0 : index
    %37 = vector.load %arg3[%c3_30, %c0_31, %c0_32] : memref<4x1024x128xbf16, #tpu.memory_space<vmem>>, vector<1x1024x128xbf16>
    %38 = vector.shape_cast %37 : vector<1x1024x128xbf16> to vector<1024x128xbf16>
    %cst_33 = arith.constant dense<0.000000e+00> : vector<2x128xf32>
    %39 = tpu.matmul %7, %38, %cst_33 {dimension_numbers = #tpu.dot_dimension_numbers<[1], [0], [0], [1], [0, 0, 1, 1], [], []>} : vector<2x1024xbf16>, vector<1024x128xbf16>, vector<2x128xf32> -> vector<2x128xf32>
    %40 = arith.addf %36, %39 : vector<2x128xf32>
    %c3_34 = arith.constant 3 : index
    %c0_35 = arith.constant 0 : index
    %c0_36 = arith.constant 0 : index
    %41 = vector.load %arg9[%c3_34, %c0_35, %c0_36] : memref<4x2x128xf32, #tpu.memory_space<vmem>>, vector<1x2x128xf32>
    %42 = vector.shape_cast %41 : vector<1x2x128xf32> to vector<2x128xf32>
    %43 = vector.shape_cast %40 : vector<2x128xf32> to vector<1x2x128xf32>
    tpu.vector_store %arg9[%c3_34, %c0_35, %c0_36], %43 {strides = array<i32>} : memref<4x2x128xf32, #tpu.memory_space<vmem>>, vector<1x2x128xf32>,
    %c0_i32_37 = arith.constant 0 : i32
    %44 = arith.cmpi eq, %arg1, %c0_i32_37 : i32
    %45 = arith.extui %44 : i1 to i32
    %c0_i32_38 = arith.constant 0 : i32
    %46 = arith.cmpi ne, %45, %c0_i32_38 : i32
    scf.if %46 {
      %c0_39 = arith.constant 0 : index
      %c0_40 = arith.constant 0 : index
      %c0_41 = arith.constant 0 : index
      %47 = vector.load %arg9[%c0_39, %c0_40, %c0_41] : memref<4x2x128xf32, #tpu.memory_space<vmem>>, vector<4x2x128xf32>
      %48 = vector.extract_strided_slice %47 {offsets = [0, 0, 0], sizes = [4, 1, 128], strides = [1, 1, 1]} : vector<4x2x128xf32> to vector<4x1x128xf32>
      %49 = vector.shape_cast %48 : vector<4x1x128xf32> to vector<4x128xf32>
      %c0_42 = arith.constant 0 : index
      %c0_43 = arith.constant 0 : index
      %50 = vector.load %arg4[%c0_42, %c0_43] : memref<32x4xf32, #tpu.memory_space<vmem>>, vector<32x4xf32>
      %cst_44 = arith.constant dense<0.000000e+00> : vector<32x128xf32>
      %51 = tpu.matmul %50, %49, %cst_44 {dimension_numbers = #tpu.dot_dimension_numbers<[1], [0], [0], [1], [0, 0, 1, 1], [], []>} : vector<32x4xf32>, vector<4x128xf32>, vector<32x128xf32> -> vector<32x128xf32>
      %c0_45 = arith.constant 0 : index
      %c0_46 = arith.constant 0 : index
      %52 = vector.load %arg5[%c0_45, %c0_46] : memref<32x1xf32, #tpu.memory_space<vmem>>, vector<32x1xf32>
      %53 = vector.broadcast %52 : vector<32x1xf32> to vector<32x128xf32>
      %54 = arith.addf %51, %53 : vector<32x128xf32>
      %55 = arith.negf %54 : vector<32x128xf32>
      %56 = math.exp %55 : vector<32x128xf32>
      %cst_47 = arith.constant 1.000000e+00 : f32
      %57 = vector.broadcast %cst_47 : f32 to vector<32x128xf32>
      %58 = arith.addf %57, %56 : vector<32x128xf32>
      %59 = arith.divf %57, %58 : vector<32x128xf32>
      %60 = arith.mulf %54, %59 : vector<32x128xf32>
      %c0_48 = arith.constant 0 : index
      %c0_49 = arith.constant 0 : index
      %61 = vector.load %arg6[%c0_48, %c0_49] : memref<4x32xf32, #tpu.memory_space<vmem>>, vector<4x32xf32>
      %cst_50 = arith.constant dense<0.000000e+00> : vector<4x128xf32>
      %62 = tpu.matmul %61, %60, %cst_50 {dimension_numbers = #tpu.dot_dimension_numbers<[1], [0], [0], [1], [0, 0, 1, 1], [], []>} : vector<4x32xf32>, vector<32x128xf32>, vector<4x128xf32> -> vector<4x128xf32>
      %c0_51 = arith.constant 0 : index
      %c0_52 = arith.constant 0 : index
      %63 = vector.load %arg7[%c0_51, %c0_52] : memref<4x1xf32, #tpu.memory_space<vmem>>, vector<4x1xf32>
      %64 = vector.broadcast %63 : vector<4x1xf32> to vector<4x128xf32>
      %65 = arith.addf %62, %64 : vector<4x128xf32>
      %66 = arith.truncf %65 : vector<4x128xf32> to vector<4x128xbf16>
      %c0_53 = arith.constant 0 : index
      %c0_54 = arith.constant 0 : index
      %c0_55 = arith.constant 0 : index
      %67 = vector.load %arg8[%c0_53, %c0_54, %c0_55] : memref<2x4x128xbf16, #tpu.memory_space<vmem>>, vector<1x4x128xbf16>
      %68 = vector.shape_cast %67 : vector<1x4x128xbf16> to vector<4x128xbf16>
      %69 = vector.shape_cast %66 : vector<4x128xbf16> to vector<1x4x128xbf16>
      tpu.vector_store %arg8[%c0_53, %c0_54, %c0_55], %69 {strides = array<i32>} : memref<2x4x128xbf16, #tpu.memory_space<vmem>>, vector<1x4x128xbf16>,
      %70 = vector.extract_strided_slice %47 {offsets = [0, 1, 0], sizes = [4, 1, 128], strides = [1, 1, 1]} : vector<4x2x128xf32> to vector<4x1x128xf32>
      %71 = vector.shape_cast %70 : vector<4x1x128xf32> to vector<4x128xf32>
      %c0_56 = arith.constant 0 : index
      %c0_57 = arith.constant 0 : index
      %72 = vector.load %arg4[%c0_56, %c0_57] : memref<32x4xf32, #tpu.memory_space<vmem>>, vector<32x4xf32>
      %cst_58 = arith.constant dense<0.000000e+00> : vector<32x128xf32>
      %73 = tpu.matmul %72, %71, %cst_58 {dimension_numbers = #tpu.dot_dimension_numbers<[1], [0], [0], [1], [0, 0, 1, 1], [], []>} : vector<32x4xf32>, vector<4x128xf32>, vector<32x128xf32> -> vector<32x128xf32>
      %c0_59 = arith.constant 0 : index
      %c0_60 = arith.constant 0 : index
      %74 = vector.load %arg5[%c0_59, %c0_60] : memref<32x1xf32, #tpu.memory_space<vmem>>, vector<32x1xf32>
      %75 = vector.broadcast %74 : vector<32x1xf32> to vector<32x128xf32>
      %76 = arith.addf %73, %75 : vector<32x128xf32>
      %77 = arith.negf %76 : vector<32x128xf32>
      %78 = math.exp %77 : vector<32x128xf32>
      %cst_61 = arith.constant 1.000000e+00 : f32
      %79 = vector.broadcast %cst_61 : f32 to vector<32x128xf32>
      %80 = arith.addf %79, %78 : vector<32x128xf32>
      %81 = arith.divf %79, %80 : vector<32x128xf32>
      %82 = arith.mulf %76, %81 : vector<32x128xf32>
      %c0_62 = arith.constant 0 : index
      %c0_63 = arith.constant 0 : index
      %83 = vector.load %arg6[%c0_62, %c0_63] : memref<4x32xf32, #tpu.memory_space<vmem>>, vector<4x32xf32>
      %cst_64 = arith.constant dense<0.000000e+00> : vector<4x128xf32>
      %84 = tpu.matmul %83, %82, %cst_64 {dimension_numbers = #tpu.dot_dimension_numbers<[1], [0], [0], [1], [0, 0, 1, 1], [], []>} : vector<4x32xf32>, vector<32x128xf32>, vector<4x128xf32> -> vector<4x128xf32>
      %c0_65 = arith.constant 0 : index
      %c0_66 = arith.constant 0 : index
      %85 = vector.load %arg7[%c0_65, %c0_66] : memref<4x1xf32, #tpu.memory_space<vmem>>, vector<4x1xf32>
      %86 = vector.broadcast %85 : vector<4x1xf32> to vector<4x128xf32>
      %87 = arith.addf %84, %86 : vector<4x128xf32>
      %88 = arith.truncf %87 : vector<4x128xf32> to vector<4x128xbf16>
      %c1_67 = arith.constant 1 : index
      %c0_68 = arith.constant 0 : index
      %c0_69 = arith.constant 0 : index
      %89 = vector.load %arg8[%c1_67, %c0_68, %c0_69] : memref<2x4x128xbf16, #tpu.memory_space<vmem>>, vector<1x4x128xbf16>
      %90 = vector.shape_cast %89 : vector<1x4x128xbf16> to vector<4x128xbf16>
      %91 = vector.shape_cast %88 : vector<4x128xbf16> to vector<1x4x128xbf16>
      tpu.vector_store %arg8[%c1_67, %c0_68, %c0_69], %91 {strides = array<i32>} : memref<2x4x128xbf16, #tpu.memory_space<vmem>>, vector<1x4x128xbf16>,
    } else {
    }
    return
  }
  func.func @transform_0(%arg0: i32, %arg1: i32) -> (i32, i32) {
    %c0_i32 = arith.constant 0 : i32
    %c0_i32_0 = arith.constant 0 : i32
    %c0_i32_1 = arith.constant 0 : i32
    return %c0_i32, %c0_i32_0 : i32, i32
  }
  func.func @transform_1(%arg0: i32, %arg1: i32) -> (i32, i32, i32) {
    %c0_i32 = arith.constant 0 : i32
    %c0_i32_0 = arith.constant 0 : i32
    return %c0_i32, %arg1, %arg0 : i32, i32, i32
  }
  func.func @transform_2(%arg0: i32, %arg1: i32) -> (i32, i32) {
    %c0_i32 = arith.constant 0 : i32
    %c0_i32_0 = arith.constant 0 : i32
    %c0_i32_1 = arith.constant 0 : i32
    return %c0_i32, %c0_i32_0 : i32, i32
  }
  func.func @transform_3(%arg0: i32, %arg1: i32) -> (i32, i32) {
    %c0_i32 = arith.constant 0 : i32
    %c0_i32_0 = arith.constant 0 : i32
    %c0_i32_1 = arith.constant 0 : i32
    return %c0_i32, %c0_i32_0 : i32, i32
  }
  func.func @transform_4(%arg0: i32, %arg1: i32) -> (i32, i32) {
    %c0_i32 = arith.constant 0 : i32
    %c0_i32_0 = arith.constant 0 : i32
    %c0_i32_1 = arith.constant 0 : i32
    return %c0_i32, %c0_i32_0 : i32, i32
  }
  func.func @transform_5(%arg0: i32, %arg1: i32) -> (i32, i32) {
    %c0_i32 = arith.constant 0 : i32
    %c0_i32_0 = arith.constant 0 : i32
    %c0_i32_1 = arith.constant 0 : i32
    return %c0_i32, %c0_i32_0 : i32, i32
  }
  func.func @transform_6(%arg0: i32, %arg1: i32) -> (i32, i32, i32) {
    %c0_i32 = arith.constant 0 : i32
    %c0_i32_0 = arith.constant 0 : i32
    %c0_i32_1 = arith.constant 0 : i32
    return %c0_i32, %c0_i32_0, %arg0 : i32, i32, i32
  }
}

</mosaic_0001>

<llo_original>
// kernel: tpu_custom_call.1
$region0: #{tpu_custom_call.1}
  #allocation0 [shape = 'u32[]', space=smem, size = 0x4, offset = 0x4, fixed_abs, tag = 'smem constant byte address 0x4 - core index']
  #allocation1 [shape = 'u32[72,128]{1,0:T(1,128)}', space=vmem, size = 0x9000, scoped, tag = 'internal scratch']
  #allocation2 [shape = 'f32[4,2,128]{2,1,0:T(2,128)}', space=vmem, size = 0x1000, scoped, tag = 'scratch operand']
  %s0 = inlined_call_operand.hbm [shape: f32[2,1024], index: 0, kind: input, shape index: {}]
  %s1 = inlined_call_operand.hbm [shape: bf16[4,1024,256], index: 1, kind: input, shape index: {}]
  %s2 = inlined_call_operand.vmem [shape: f32[32,4], index: 2, kind: input, shape index: {}]
  %s3 = inlined_call_operand.vmem [shape: f32[32,1], index: 3, kind: input, shape index: {}]
  %s4 = inlined_call_operand.hbm [shape: f32[4,32], index: 4, kind: input, shape index: {}]
  %s5 = inlined_call_operand.vmem [shape: f32[4,1], index: 5, kind: input, shape index: {}]
  %s6 = inlined_call_operand.hbm [shape: bf16[2,4,256], index: 6, kind: output, shape index: {}]
  %s7 = sld [smem:[#allocation0]]
  $region77: #{tpu_custom_call.1} parent=0
    _
  %s9 = ssub.s32 1, %s7
  %s10 = scalar_select 0, %s9, %s7
  $region1: #{tpu_custom_call.1} parent=0
    #allocation3 [shape = 'u8[8192]{0}', space=vmem, size = 0x2000, scoped, tag = 'input window, operand 0, single buffered']
    #allocation4 [shape = 's32[2]{0}', space=sflag, size = 0x8, scoped, tag = 'scoped memory for tpu_custom_call.1']
    #allocation5 [shape = 's32[2]{0}', space=sflag, size = 0x8, scoped, tag = 'scoped memory for tpu_custom_call.1']
    #allocation6 [shape = 'u8[2097152]{0}', space=vmem, size = 0x200000, scoped, tag = 'input window, operand 1']
    #allocation7 [shape = 's32[2]{0}', space=sflag, size = 0x8, scoped, tag = 'scoped memory for tpu_custom_call.1']
    #allocation8 [shape = 'u8[2048]{0}', space=vmem, size = 0x800, scoped, tag = 'input window, operand 4, single buffered']
    #allocation9 [shape = 'u8[4096]{0}', space=vmem, size = 0x1000, scoped, tag = 'output window, operand 0']
    %11 = vsyncpa [#allocation4], 0
    %12 = vsyncpa [#allocation7], 0
    %s13 = scalar_lea.sflag [#allocation7], 1
    %14 = vsyncpa %s13, 0
    %15 = vsyncpa [#allocation5], 0
    %s16 = scalar_lea.sflag [#allocation5], 1
    %17 = vsyncpa %s16, 0
    loop: start=0, step=1, limit=4
    $region2: #{tpu_custom_call.1} parent=1 // loop_pre_header
      _
    $region3: #{tpu_custom_call.1} parent=1 // loop_header
      %s19 = sphi 0, %s23
      %p20 = scmp.ge.s32.totalorder %s19, 4
      %s26 = sphi 0, %s38
      %s27 = sphi 0, %s34
      %s28 = sphi 0, %s26
      %s29 = sphi 0, %s27
      %s30 = sphi 0, %s28
      %s31 = sphi 0, %s29
      %s39 = sphi 0, %s39
      %s41 = sphi 0, %s39
      %s42 = sphi 0, %s41
      %s56 = sphi 0, %s42
      %s64 = sphi 0, %s66
      %s67 = sphi 0, %s64
      %s68 = sphi 0, %s67
      %s84 = sphi 0, %s68
      %s88 = sphi 0, %s88
      %s90 = sphi 0, %s88
      %s91 = sphi 0, %s90
      %s105 = sphi 0, %s91
      %s109 = sphi 0, %s109
      %s111 = sphi 0, %s109
      %s112 = sphi 0, %s111
      %s126 = sphi 0, %s112
      %s130 = sphi 0, %s130
      %s132 = sphi 0, %s130
      %s133 = sphi 0, %s132
      %s147 = sphi 0, %s133
      %s151 = sphi 0, %s151
      %s153 = sphi 0, %s151
      %s154 = sphi 0, %s153
      %s168 = sphi 0, %s154
      %s174 = sphi 0, %s176
      %s177 = sphi 0, %s174
      %s178 = sphi 0, %s177
      %s194 = sphi 0, %s178
    $region4: #{tpu_custom_call.1} parent=1 // loop_header_branch
      %22 = sbr.rel (%p20) target = $region8
    $region5: #{tpu_custom_call.1} parent=1 // loop_body
      %s24 = ssub.s32 %s19, 1
      %s25 = ssub.s32 %s19, 2
      %s32 = sadd.s32 1, %s27
      %p33 = scmp.ge.s32.totalorder %s32, 1
      %s34 = scalar_select %p33, 0, %s32
      %s35 = sadd.s32 1, %s26
      %s36 = scalar_select %p33, %s35, %s26
      %p37 = scmp.ge.s32.totalorder %s36, 2
      %s38 = scalar_select %p37, 0, %s36
      %s40 = sadd.s32 %s39, 1
      %p43 = scmp.eq.s32.totalorder %s19, 1
      %p44 = scmp.ne.s32.totalorder %s39, %s41
      %p45 = scmp.eq.s32.totalorder %s19, 0
      %p46 = por %p44, %p45
      %p47 = scmp.ne.s32.totalorder %s39, %s41
      %p48 = scmp.eq.s32.totalorder %s24, 1
      %p49 = por %p47, %p48
      %p50 = scmp.ne.s32.totalorder %s41, %s42
      %p51 = scmp.eq.s32.totalorder %s24, 0
      %p52 = por %p50, %p51
      %p53 = scmp.ne.s32.totalorder %s41, %s42
      %p54 = scmp.eq.s32.totalorder %s25, 1
      %p55 = por %p53, %p54
      %p57 = scmp.ne.s32.totalorder %s42, %s56
      %p58 = scmp.eq.s32.totalorder %s25, 0
      %p59 = por %p57, %p58
      %s60 = ssub.s32 %s27, %s34
      %s61 = ssub.s32 %s26, %s38
      %s62 = sor.u32 %s60, %s61
      %p63 = scmp.eq.s32.totalorder %s62, 0
      %s65 = sadd.s32 %s64, 1
      %s66 = scalar_select %p63, %s64, %s65
      %p69 = pneg %p63
      %p70 = scmp.eq.s32.totalorder %s19, 1
      %p71 = por %p69, %p70
      %p72 = scmp.ne.s32.totalorder %s64, %s67
      %p73 = scmp.eq.s32.totalorder %s19, 0
      %p74 = por %p72, %p73
      %p75 = scmp.ne.s32.totalorder %s64, %s67
      %p76 = scmp.eq.s32.totalorder %s24, 1
      %p77 = por %p75, %p76
      %p78 = scmp.ne.s32.totalorder %s67, %s68
      %p79 = scmp.eq.s32.totalorder %s24, 0
      %p80 = por %p78, %p79
      %p81 = scmp.ne.s32.totalorder %s67, %s68
      %p82 = scmp.eq.s32.totalorder %s25, 1
      %p83 = por %p81, %p82
      %p85 = scmp.ne.s32.totalorder %s68, %s84
      %p86 = scmp.eq.s32.totalorder %s25, 0
      %p87 = por %p85, %p86
      %s89 = sadd.s32 %s88, 1
      %p92 = scmp.eq.s32.totalorder %s19, 1
      %p93 = scmp.ne.s32.totalorder %s88, %s90
      %p94 = scmp.eq.s32.totalorder %s19, 0
      %p95 = por %p93, %p94
      %p96 = scmp.ne.s32.totalorder %s88, %s90
      %p97 = scmp.eq.s32.totalorder %s24, 1
      %p98 = por %p96, %p97
      %p99 = scmp.ne.s32.totalorder %s90, %s91
      %p100 = scmp.eq.s32.totalorder %s24, 0
      %p101 = por %p99, %p100
      %p102 = scmp.ne.s32.totalorder %s90, %s91
      %p103 = scmp.eq.s32.totalorder %s25, 1
      %p104 = por %p102, %p103
      %p106 = scmp.ne.s32.totalorder %s91, %s105
      %p107 = scmp.eq.s32.totalorder %s25, 0
      %p108 = por %p106, %p107
      %s110 = sadd.s32 %s109, 1
      %p113 = scmp.eq.s32.totalorder %s19, 1
      %p114 = scmp.ne.s32.totalorder %s109, %s111
      %p115 = scmp.eq.s32.totalorder %s19, 0
      %p116 = por %p114, %p115
      %p117 = scmp.ne.s32.totalorder %s109, %s111
      %p118 = scmp.eq.s32.totalorder %s24, 1
      %p119 = por %p117, %p118
      %p120 = scmp.ne.s32.totalorder %s111, %s112
      %p121 = scmp.eq.s32.totalorder %s24, 0
      %p122 = por %p120, %p121
      %p123 = scmp.ne.s32.totalorder %s111, %s112
      %p124 = scmp.eq.s32.totalorder %s25, 1
      %p125 = por %p123, %p124
      %p127 = scmp.ne.s32.totalorder %s112, %s126
      %p128 = scmp.eq.s32.totalorder %s25, 0
      %p129 = por %p127, %p128
      %s131 = sadd.s32 %s130, 1
      %p134 = scmp.eq.s32.totalorder %s19, 1
      %p135 = scmp.ne.s32.totalorder %s130, %s132
      %p136 = scmp.eq.s32.totalorder %s19, 0
      %p137 = por %p135, %p136
      %p138 = scmp.ne.s32.totalorder %s130, %s132
      %p139 = scmp.eq.s32.totalorder %s24, 1
      %p140 = por %p138, %p139
      %p141 = scmp.ne.s32.totalorder %s132, %s133
      %p142 = scmp.eq.s32.totalorder %s24, 0
      %p143 = por %p141, %p142
      %p144 = scmp.ne.s32.totalorder %s132, %s133
      %p145 = scmp.eq.s32.totalorder %s25, 1
      %p146 = por %p144, %p145
      %p148 = scmp.ne.s32.totalorder %s133, %s147
      %p149 = scmp.eq.s32.totalorder %s25, 0
      %p150 = por %p148, %p149
      %s152 = sadd.s32 %s151, 1
      %p155 = scmp.eq.s32.totalorder %s19, 1
      %p156 = scmp.ne.s32.totalorder %s151, %s153
      %p157 = scmp.eq.s32.totalorder %s19, 0
      %p158 = por %p156, %p157
      %p159 = scmp.ne.s32.totalorder %s151, %s153
      %p160 = scmp.eq.s32.totalorder %s24, 1
      %p161 = por %p159, %p160
      %p162 = scmp.ne.s32.totalorder %s153, %s154
      %p163 = scmp.eq.s32.totalorder %s24, 0
      %p164 = por %p162, %p163
      %p165 = scmp.ne.s32.totalorder %s153, %s154
      %p166 = scmp.eq.s32.totalorder %s25, 1
      %p167 = por %p165, %p166
      %p169 = scmp.ne.s32.totalorder %s154, %s168
      %p170 = scmp.eq.s32.totalorder %s25, 0
      %p171 = por %p169, %p170
      %s172 = ssub.s32 %s26, %s38
      %p173 = scmp.eq.s32.totalorder %s172, 0
      %s175 = sadd.s32 %s174, 1
      %s176 = scalar_select %p173, %s174, %s175
      %p179 = pneg %p173
      %p180 = scmp.eq.s32.totalorder %s19, 1
      %p181 = por %p179, %p180
      %p182 = scmp.ne.s32.totalorder %s174, %s177
      %p183 = scmp.eq.s32.totalorder %s19, 0
      %p184 = por %p182, %p183
      %p185 = scmp.ne.s32.totalorder %s174, %s177
      %p186 = scmp.eq.s32.totalorder %s24, 1
      %p187 = por %p185, %p186
      %p188 = scmp.ne.s32.totalorder %s177, %s178
      %p189 = scmp.eq.s32.totalorder %s24, 0
      %p190 = por %p188, %p189
      %p191 = scmp.ne.s32.totalorder %s177, %s178
      %p192 = scmp.eq.s32.totalorder %s25, 1
      %p193 = por %p191, %p192
      %p195 = scmp.ne.s32.totalorder %s178, %s194
      %p196 = scmp.eq.s32.totalorder %s25, 0
      %p197 = por %p195, %p196
      %p198 = scmp.le.s32.totalorder 1, %s19
      %p199 = scmp.lt.s32.totalorder %s19, 3
      %p200 = pnand %p198, %p199
      %p201 = pneg %p200
      // Predicated region
      $region9: #{tpu_custom_call.1} parent=5 // pred_check
        _
      $region10: #{tpu_custom_call.1} parent=5 // pred_check_branch
        %203 = sbr.rel (%p200) target = $region12
      $region11: #{tpu_custom_call.1} parent=5 // pred_region
        %s204 = ssub.s32 %s19, 1
        // Predicated region
        $region13: #{tpu_custom_call.1} parent=11 // pred_check
          %p205 = pneg %p52
        $region14: #{tpu_custom_call.1} parent=11 // pred_check_branch
          %207 = sbr.rel (%p205) target = $region16
        $region15: #{tpu_custom_call.1} parent=11 // pred_region
          %209 = vsyncadd [#allocation4], 0
          %s211 = sshll.u32 %s0, 4
          %s212 = int_to_ptr.hbm [resolvable:$true] %s211
          %s213 = sshll.u32 [#allocation3], 4
          %s214 = int_to_ptr.vmem [resolvable:$true] %s213
          %216 = dma.hbm_to_vmem [thread:$0]  %s212, 256, %s214, [#allocation4]
        $region16: #{tpu_custom_call.1} parent=11 // pred_fallthru
          _
        // Predicated region
        $region17: #{tpu_custom_call.1} parent=11 // pred_check
          %p217 = pneg %p101
        $region18: #{tpu_custom_call.1} parent=11 // pred_check_branch
          %219 = sbr.rel (%p217) target = $region20
        $region19: #{tpu_custom_call.1} parent=11 // pred_region
          _
        $region20: #{tpu_custom_call.1} parent=11 // pred_fallthru
          _
        // Predicated region
        $region21: #{tpu_custom_call.1} parent=11 // pred_check
          %p220 = pneg %p122
        $region22: #{tpu_custom_call.1} parent=11 // pred_check_branch
          %222 = sbr.rel (%p220) target = $region24
        $region23: #{tpu_custom_call.1} parent=11 // pred_region
          _
        $region24: #{tpu_custom_call.1} parent=11 // pred_fallthru
          _
        // Predicated region
        $region25: #{tpu_custom_call.1} parent=11 // pred_check
          %p223 = pneg %p143
        $region26: #{tpu_custom_call.1} parent=11 // pred_check_branch
          %225 = sbr.rel (%p223) target = $region28
        $region27: #{tpu_custom_call.1} parent=11 // pred_region
          %227 = vsyncadd [#allocation7], 0
          %s229 = sshll.u32 %s4, 4
          %s230 = int_to_ptr.hbm [resolvable:$true] %s229
          %s231 = sshll.u32 [#allocation8], 4
          %s232 = int_to_ptr.vmem [resolvable:$true] %s231
          %234 = dma.hbm_to_vmem [thread:$0]  %s230, 64, %s232, [#allocation7]
        $region28: #{tpu_custom_call.1} parent=11 // pred_fallthru
          _
        // Predicated region
        $region29: #{tpu_custom_call.1} parent=11 // pred_check
          %p235 = pneg %p164
        $region30: #{tpu_custom_call.1} parent=11 // pred_check_branch
          %237 = sbr.rel (%p235) target = $region32
        $region31: #{tpu_custom_call.1} parent=11 // pred_region
          _
        $region32: #{tpu_custom_call.1} parent=11 // pred_fallthru
          _
      $region12: #{tpu_custom_call.1} parent=5 // pred_fallthru
        _
      %p238 = scmp.lt.s32.totalorder %s19, 2
      // Predicated region
      $region33: #{tpu_custom_call.1} parent=5 // pred_check
        %p239 = pneg %p238
      $region34: #{tpu_custom_call.1} parent=5 // pred_check_branch
        %241 = sbr.rel (%p239) target = $region36
      $region35: #{tpu_custom_call.1} parent=5 // pred_region
        // Predicated region
        $region37: #{tpu_custom_call.1} parent=35 // pred_check
          %p242 = pneg %p74
        $region38: #{tpu_custom_call.1} parent=35 // pred_check_branch
          %244 = sbr.rel (%p242) target = $region40
        $region39: #{tpu_custom_call.1} parent=35 // pred_region
          %s245 = sand.u32 %s19, 1
          %s246 = scalar_lea.sflag [#allocation7], %s245
          %s247 = sand.u32 %s64, 1
          %s248 = smul.addr %s247, 2048
          %s249 = scalar_lea.vmem [#allocation6], %s248
          %s250 = smul.u32 128, %s27
          %252 = vsyncadd %s246, 0
          %s253 = smul.addr %s250, 2
          %s254 = sadd.s32 %s26, %s253
          %s255 = smul.addr %s254, 4
          %s256 = scalar_lea.hbm %s1, %s255
          %s257 = sshll.u32 %s256, 4
          %s258 = int_to_ptr.hbm [resolvable:$true] %s257
          %s259 = sshll.u32 %s249, 4
          %s260 = int_to_ptr.vmem [resolvable:$true] %s259
          %265 = dma.hbm_to_vmem [thread:$0]  %s258, 32768, %s260, %s246, 128, 64, 4
        $region40: #{tpu_custom_call.1} parent=35 // pred_fallthru
          _
      $region36: #{tpu_custom_call.1} parent=5 // pred_fallthru
        _
      %p266 = scmp.le.s32.totalorder 1, %s19
      %p267 = scmp.lt.s32.totalorder %s19, 3
      %p268 = pnand %p266, %p267
      %p269 = pneg %p268
      // Predicated region
      $region41: #{tpu_custom_call.1} parent=5 // pred_check
        _
      $region42: #{tpu_custom_call.1} parent=5 // pred_check_branch
        %271 = sbr.rel (%p268) target = $region44
      $region43: #{tpu_custom_call.1} parent=5 // pred_region
        %s272 = ssub.s32 %s19, 1
        // Predicated region
        $region45: #{tpu_custom_call.1} parent=43 // pred_check
          %p273 = pneg %p52
        $region46: #{tpu_custom_call.1} parent=43 // pred_check_branch
          %275 = sbr.rel (%p273) target = $region48
        $region47: #{tpu_custom_call.1} parent=43 // pred_region
          %277 = dma.done [#allocation4], 256
        $region48: #{tpu_custom_call.1} parent=43 // pred_fallthru
          _
        %s278 = sand.u32 %s24, 1
        %s279 = scalar_lea.sflag [#allocation7], %s278
        %s280 = sand.u32 %s67, 1
        %s281 = smul.addr %s280, 2048
        %s282 = scalar_lea.vmem [#allocation6], %s281
        // Predicated region
        $region49: #{tpu_custom_call.1} parent=43 // pred_check
          %p283 = pneg %p80
        $region50: #{tpu_custom_call.1} parent=43 // pred_check_branch
          %285 = sbr.rel (%p283) target = $region52
        $region51: #{tpu_custom_call.1} parent=43 // pred_region
          %287 = dma.done %s279, 32768
        $region52: #{tpu_custom_call.1} parent=43 // pred_fallthru
          _
        // Predicated region
        $region53: #{tpu_custom_call.1} parent=43 // pred_check
          %p288 = pneg %p143
        $region54: #{tpu_custom_call.1} parent=43 // pred_check_branch
          %290 = sbr.rel (%p288) target = $region56
        $region55: #{tpu_custom_call.1} parent=43 // pred_region
          %292 = dma.done [#allocation7], 64
        $region56: #{tpu_custom_call.1} parent=43 // pred_fallthru
          _
        %p293 = pneg %p52
        %p294 = pneg %p49
        %s295 = sand.u32 %s24, 1
        %s296 = scalar_lea.sflag [#allocation7], %s295
        %s297 = sand.u32 %s67, 1
        %s298 = smul.addr %s297, 2048
        %s299 = scalar_lea.vmem [#allocation6], %s298
        %p300 = pneg %p80
        %p301 = pneg %p77
        %p302 = pneg %p101
        %p303 = pneg %p98
        %p304 = pneg %p122
        %p305 = pneg %p119
        %p306 = pneg %p143
        %p307 = pneg %p140
        %p308 = pneg %p164
        %p309 = pneg %p161
        %p310 = pneg %p190
        %p311 = pneg %p187
        %s312 = sand.u32 %s177, 1
        %s313 = scalar_lea.sflag [#allocation5], %s312
        %s314 = sand.u32 %s177, 1
        %s315 = smul.addr %s314, 4
        %s316 = scalar_lea.vmem [#allocation9], %s315
        %s317 = smul.u32 128, %s29
        %p318 = scmp.eq.s32.totalorder %s29, 0
        // Predicated region
        $region57: #{tpu_custom_call.1} parent=43 // pred_check
          %p319 = pneg %p318
        $region58: #{tpu_custom_call.1} parent=43 // pred_check_branch
          %321 = sbr.rel (%p319) target = $region60
        $region59: #{tpu_custom_call.1} parent=43 // pred_region
          %322 = vst [vmem:[#allocation2] sm:$0x3] 0.0
          %323 = vst [vmem:[#allocation2 + $0x2] sm:$0x3] 0.0
          %324 = vst [vmem:[#allocation2 + $0x4] sm:$0x3] 0.0
          %325 = vst [vmem:[#allocation2 + $0x6] sm:$0x3] 0.0
        $region60: #{tpu_custom_call.1} parent=43 // pred_fallthru
          _
        %s326 = smul.u32 %s29, 1024
        %s327 = sshra.s32 %s326, 7
        %s328 = sand.u32 %s326, 127
        %s329 = smul.addr %s327, 2
        %s330 = scalar_lea.vmem [#allocation3], %s329
        %v331 = vld [vmem:[%s330] sm:$0xff]
        %v332 = vld [vmem:[%s330 + $0x8] sm:$0xff]
        %335 = vst [vmem:[#allocation1] ss:$4 sm:$0xff] %v331
        %s336 = scalar_lea.vmem [#allocation1], 32
        %337 = vst [vmem:[%s336] ss:$4 sm:$0xff] %v332
        %v338 = vld.sshfl [vmem:[#allocation1] sm:$0xff pattern:$0x73625140]
        %v339 = vld.sshfl [vmem:[#allocation1 + $0x8] sm:$0xff pattern:$0x73625140]
        %v340 = vld.sshfl [vmem:[#allocation1 + $0x10] sm:$0xff pattern:$0x73625140]
        %v341 = vld.sshfl [vmem:[#allocation1 + $0x18] sm:$0xff pattern:$0x73625140]
        %v342 = vld.sshfl [vmem:[#allocation1 + $0x20] sm:$0xff pattern:$0x73625140]
        %v343 = vld.sshfl [vmem:[#allocation1 + $0x28] sm:$0xff pattern:$0x73625140]
        %v344 = vld.sshfl [vmem:[#allocation1 + $0x30] sm:$0xff pattern:$0x73625140]
        %v345 = vld.sshfl [vmem:[#allocation1 + $0x38] sm:$0xff pattern:$0x73625140]
        %v354 = vpack.c.bf16 %v338, %v338
        %v355 = vpack.c.bf16 %v339, %v339
        %v356 = vpack.c.bf16 %v340, %v340
        %v357 = vpack.c.bf16 %v341, %v341
        %v358 = vpack.c.bf16 %v342, %v342
        %v359 = vpack.c.bf16 %v343, %v343
        %v360 = vpack.c.bf16 %v344, %v344
        %v361 = vpack.c.bf16 %v345, %v345
        %v362 = vld [vmem:[#allocation2] sm:$0x3]
        %v363 = vld [vmem:[%s282] sm:$0xf]
        %v364 = vld [vmem:[%s282 + $0x4] sm:$0xf]
        %v365 = vld [vmem:[%s282 + $0x8] sm:$0xf]
        %v366 = vld [vmem:[%s282 + $0xc] sm:$0xf]
        %v367 = vld [vmem:[%s282 + $0x10] sm:$0xf]
        %v368 = vld [vmem:[%s282 + $0x14] sm:$0xf]
        %v369 = vld [vmem:[%s282 + $0x18] sm:$0xf]
        %v370 = vld [vmem:[%s282 + $0x1c] sm:$0xf]
        %v371 = vld [vmem:[%s282 + $0x20] sm:$0xf]
        %v372 = vld [vmem:[%s282 + $0x24] sm:$0xf]
        %v373 = vld [vmem:[%s282 + $0x28] sm:$0xf]
        %v374 = vld [vmem:[%s282 + $0x2c] sm:$0xf]
        %v375 = vld [vmem:[%s282 + $0x30] sm:$0xf]
        %v376 = vld [vmem:[%s282 + $0x34] sm:$0xf]
        %v377 = vld [vmem:[%s282 + $0x38] sm:$0xf]
        %v378 = vld [vmem:[%s282 + $0x3c] sm:$0xf]
        %v379 = vld [vmem:[%s282 + $0x40] sm:$0xf]
        %v380 = vld [vmem:[%s282 + $0x44] sm:$0xf]
        %v381 = vld [vmem:[%s282 + $0x48] sm:$0xf]
        %v382 = vld [vmem:[%s282 + $0x4c] sm:$0xf]
        %v383 = vld [vmem:[%s282 + $0x50] sm:$0xf]
        %v384 = vld [vmem:[%s282 + $0x54] sm:$0xf]
        %v385 = vld [vmem:[%s282 + $0x58] sm:$0xf]
        %v386 = vld [vmem:[%s282 + $0x5c] sm:$0xf]
        %v387 = vld [vmem:[%s282 + $0x60] sm:$0xf]
        %v388 = vld [vmem:[%s282 + $0x64] sm:$0xf]
        %v389 = vld [vmem:[%s282 + $0x68] sm:$0xf]
        %v390 = vld [vmem:[%s282 + $0x6c] sm:$0xf]
        %v391 = vld [vmem:[%s282 + $0x70] sm:$0xf]
        %v392 = vld [vmem:[%s282 + $0x74] sm:$0xf]
        %v393 = vld [vmem:[%s282 + $0x78] sm:$0xf]
        %v394 = vld [vmem:[%s282 + $0x7c] sm:$0xf]
        %v395 = vld [vmem:[%s282 + $0x80] sm:$0xf]
        %v396 = vld [vmem:[%s282 + $0x84] sm:$0xf]
        %v397 = vld [vmem:[%s282 + $0x88] sm:$0xf]
        %v398 = vld [vmem:[%s282 + $0x8c] sm:$0xf]
        %v399 = vld [vmem:[%s282 + $0x90] sm:$0xf]
        %v400 = vld [vmem:[%s282 + $0x94] sm:$0xf]
        %v401 = vld [vmem:[%s282 + $0x98] sm:$0xf]
        %v402 = vld [vmem:[%s282 + $0x9c] sm:$0xf]
        %v403 = vld [vmem:[%s282 + $0xa0] sm:$0xf]
        %v404 = vld [vmem:[%s282 + $0xa4] sm:$0xf]
        %v405 = vld [vmem:[%s282 + $0xa8] sm:$0xf]
        %v406 = vld [vmem:[%s282 + $0xac] sm:$0xf]
        %v407 = vld [vmem:[%s282 + $0xb0] sm:$0xf]
        %v408 = vld [vmem:[%s282 + $0xb4] sm:$0xf]
        %v409 = vld [vmem:[%s282 + $0xb8] sm:$0xf]
        %v410 = vld [vmem:[%s282 + $0xbc] sm:$0xf]
        %v411 = vld [vmem:[%s282 + $0xc0] sm:$0xf]
        %v412 = vld [vmem:[%s282 + $0xc4] sm:$0xf]
        %v413 = vld [vmem:[%s282 + $0xc8] sm:$0xf]
        %v414 = vld [vmem:[%s282 + $0xcc] sm:$0xf]
        %v415 = vld [vmem:[%s282 + $0xd0] sm:$0xf]
        %v416 = vld [vmem:[%s282 + $0xd4] sm:$0xf]
        %v417 = vld [vmem:[%s282 + $0xd8] sm:$0xf]
        %v418 = vld [vmem:[%s282 + $0xdc] sm:$0xf]
        %v419 = vld [vmem:[%s282 + $0xe0] sm:$0xf]
        %v420 = vld [vmem:[%s282 + $0xe4] sm:$0xf]
        %v421 = vld [vmem:[%s282 + $0xe8] sm:$0xf]
        %v422 = vld [vmem:[%s282 + $0xec] sm:$0xf]
        %v423 = vld [vmem:[%s282 + $0xf0] sm:$0xf]
        %v424 = vld [vmem:[%s282 + $0xf4] sm:$0xf]
        %v425 = vld [vmem:[%s282 + $0xf8] sm:$0xf]
        %v426 = vld [vmem:[%s282 + $0xfc] sm:$0xf]
        %v427 = vld [vmem:[%s282 + $0x100] sm:$0xf]
        %v428 = vld [vmem:[%s282 + $0x104] sm:$0xf]
        %v429 = vld [vmem:[%s282 + $0x108] sm:$0xf]
        %v430 = vld [vmem:[%s282 + $0x10c] sm:$0xf]
        %v431 = vld [vmem:[%s282 + $0x110] sm:$0xf]
        %v432 = vld [vmem:[%s282 + $0x114] sm:$0xf]
        %v433 = vld [vmem:[%s282 + $0x118] sm:$0xf]
        %v434 = vld [vmem:[%s282 + $0x11c] sm:$0xf]
        %v435 = vld [vmem:[%s282 + $0x120] sm:$0xf]
        %v436 = vld [vmem:[%s282 + $0x124] sm:$0xf]
        %v437 = vld [vmem:[%s282 + $0x128] sm:$0xf]
        %v438 = vld [vmem:[%s282 + $0x12c] sm:$0xf]
        %v439 = vld [vmem:[%s282 + $0x130] sm:$0xf]
        %v440 = vld [vmem:[%s282 + $0x134] sm:$0xf]
        %v441 = vld [vmem:[%s282 + $0x138] sm:$0xf]
        %v442 = vld [vmem:[%s282 + $0x13c] sm:$0xf]
        %v443 = vld [vmem:[%s282 + $0x140] sm:$0xf]
        %v444 = vld [vmem:[%s282 + $0x144] sm:$0xf]
        %v445 = vld [vmem:[%s282 + $0x148] sm:$0xf]
        %v446 = vld [vmem:[%s282 + $0x14c] sm:$0xf]
        %v447 = vld [vmem:[%s282 + $0x150] sm:$0xf]
        %v448 = vld [vmem:[%s282 + $0x154] sm:$0xf]
        %v449 = vld [vmem:[%s282 + $0x158] sm:$0xf]
        %v450 = vld [vmem:[%s282 + $0x15c] sm:$0xf]
        %v451 = vld [vmem:[%s282 + $0x160] sm:$0xf]
        %v452 = vld [vmem:[%s282 + $0x164] sm:$0xf]
        %v453 = vld [vmem:[%s282 + $0x168] sm:$0xf]
        %v454 = vld [vmem:[%s282 + $0x16c] sm:$0xf]
        %v455 = vld [vmem:[%s282 + $0x170] sm:$0xf]
        %v456 = vld [vmem:[%s282 + $0x174] sm:$0xf]
        %v457 = vld [vmem:[%s282 + $0x178] sm:$0xf]
        %v458 = vld [vmem:[%s282 + $0x17c] sm:$0xf]
        %v459 = vld [vmem:[%s282 + $0x180] sm:$0xf]
        %v460 = vld [vmem:[%s282 + $0x184] sm:$0xf]
        %v461 = vld [vmem:[%s282 + $0x188] sm:$0xf]
        %v462 = vld [vmem:[%s282 + $0x18c] sm:$0xf]
        %v463 = vld [vmem:[%s282 + $0x190] sm:$0xf]
        %v464 = vld [vmem:[%s282 + $0x194] sm:$0xf]
        %v465 = vld [vmem:[%s282 + $0x198] sm:$0xf]
        %v466 = vld [vmem:[%s282 + $0x19c] sm:$0xf]
        %v467 = vld [vmem:[%s282 + $0x1a0] sm:$0xf]
        %v468 = vld [vmem:[%s282 + $0x1a4] sm:$0xf]
        %v469 = vld [vmem:[%s282 + $0x1a8] sm:$0xf]
        %v470 = vld [vmem:[%s282 + $0x1ac] sm:$0xf]
        %v471 = vld [vmem:[%s282 + $0x1b0] sm:$0xf]
        %v472 = vld [vmem:[%s282 + $0x1b4] sm:$0xf]
        %v473 = vld [vmem:[%s282 + $0x1b8] sm:$0xf]
        %v474 = vld [vmem:[%s282 + $0x1bc] sm:$0xf]
        %v475 = vld [vmem:[%s282 + $0x1c0] sm:$0xf]
        %v476 = vld [vmem:[%s282 + $0x1c4] sm:$0xf]
        %v477 = vld [vmem:[%s282 + $0x1c8] sm:$0xf]
        %v478 = vld [vmem:[%s282 + $0x1cc] sm:$0xf]
        %v479 = vld [vmem:[%s282 + $0x1d0] sm:$0xf]
        %v480 = vld [vmem:[%s282 + $0x1d4] sm:$0xf]
        %v481 = vld [vmem:[%s282 + $0x1d8] sm:$0xf]
        %v482 = vld [vmem:[%s282 + $0x1dc] sm:$0xf]
        %v483 = vld [vmem:[%s282 + $0x1e0] sm:$0xf]
        %v484 = vld [vmem:[%s282 + $0x1e4] sm:$0xf]
        %v485 = vld [vmem:[%s282 + $0x1e8] sm:$0xf]
        %v486 = vld [vmem:[%s282 + $0x1ec] sm:$0xf]
        %v487 = vld [vmem:[%s282 + $0x1f0] sm:$0xf]
        %v488 = vld [vmem:[%s282 + $0x1f4] sm:$0xf]
        %v489 = vld [vmem:[%s282 + $0x1f8] sm:$0xf]
        %v490 = vld [vmem:[%s282 + $0x1fc] sm:$0xf]
        %v619 = vunpack.c.l.b16 %v363
        %v620 = vunpack.c.l.b16 %v364
        %v621 = vunpack.c.l.b16 %v365
        %v622 = vunpack.c.l.b16 %v366
        %v623 = vunpack.c.l.b16 %v367
        %v624 = vunpack.c.l.b16 %v368
        %v625 = vunpack.c.l.b16 %v369
        %v626 = vunpack.c.l.b16 %v370
        %v627 = vunpack.c.l.b16 %v371
        %v628 = vunpack.c.l.b16 %v372
        %v629 = vunpack.c.l.b16 %v373
        %v630 = vunpack.c.l.b16 %v374
        %v631 = vunpack.c.l.b16 %v375
        %v632 = vunpack.c.l.b16 %v376
        %v633 = vunpack.c.l.b16 %v377
        %v634 = vunpack.c.l.b16 %v378
        %v635 = vunpack.c.l.b16 %v379
        %v636 = vunpack.c.l.b16 %v380
        %v637 = vunpack.c.l.b16 %v381
        %v638 = vunpack.c.l.b16 %v382
        %v639 = vunpack.c.l.b16 %v383
        %v640 = vunpack.c.l.b16 %v384
        %v641 = vunpack.c.l.b16 %v385
        %v642 = vunpack.c.l.b16 %v386
        %v643 = vunpack.c.l.b16 %v387
        %v644 = vunpack.c.l.b16 %v388
        %v645 = vunpack.c.l.b16 %v389
        %v646 = vunpack.c.l.b16 %v390
        %v647 = vunpack.c.l.b16 %v391
        %v648 = vunpack.c.l.b16 %v392
        %v649 = vunpack.c.l.b16 %v393
        %v650 = vunpack.c.l.b16 %v394
        %v651 = vunpack.c.l.b16 %v395
        %v652 = vunpack.c.l.b16 %v396
        %v653 = vunpack.c.l.b16 %v397
        %v654 = vunpack.c.l.b16 %v398
        %v655 = vunpack.c.l.b16 %v399
        %v656 = vunpack.c.l.b16 %v400
        %v657 = vunpack.c.l.b16 %v401
        %v658 = vunpack.c.l.b16 %v402
        %v659 = vunpack.c.l.b16 %v403
        %v660 = vunpack.c.l.b16 %v404
        %v661 = vunpack.c.l.b16 %v405
        %v662 = vunpack.c.l.b16 %v406
        %v663 = vunpack.c.l.b16 %v407
        %v664 = vunpack.c.l.b16 %v408
        %v665 = vunpack.c.l.b16 %v409
        %v666 = vunpack.c.l.b16 %v410
        %v667 = vunpack.c.l.b16 %v411
        %v668 = vunpack.c.l.b16 %v412
        %v669 = vunpack.c.l.b16 %v413
        %v670 = vunpack.c.l.b16 %v414
        %v671 = vunpack.c.l.b16 %v415
        %v672 = vunpack.c.l.b16 %v416
        %v673 = vunpack.c.l.b16 %v417
        %v674 = vunpack.c.l.b16 %v418
        %v675 = vunpack.c.l.b16 %v419
        %v676 = vunpack.c.l.b16 %v420
        %v677 = vunpack.c.l.b16 %v421
        %v678 = vunpack.c.l.b16 %v422
        %v679 = vunpack.c.l.b16 %v423
        %v680 = vunpack.c.l.b16 %v424
        %v681 = vunpack.c.l.b16 %v425
        %v682 = vunpack.c.l.b16 %v426
        %v683 = vunpack.c.l.b16 %v427
        %v684 = vunpack.c.l.b16 %v428
        %v685 = vunpack.c.l.b16 %v429
        %v686 = vunpack.c.l.b16 %v430
        %v687 = vunpack.c.l.b16 %v431
        %v688 = vunpack.c.l.b16 %v432
        %v689 = vunpack.c.l.b16 %v433
        %v690 = vunpack.c.l.b16 %v434
        %v691 = vunpack.c.l.b16 %v435
        %v692 = vunpack.c.l.b16 %v436
        %v693 = vunpack.c.l.b16 %v437
        %v694 = vunpack.c.l.b16 %v438
        %v695 = vunpack.c.l.b16 %v439
        %v696 = vunpack.c.l.b16 %v440
        %v697 = vunpack.c.l.b16 %v441
        %v698 = vunpack.c.l.b16 %v442
        %v699 = vunpack.c.l.b16 %v443
        %v700 = vunpack.c.l.b16 %v444
        %v701 = vunpack.c.l.b16 %v445
        %v702 = vunpack.c.l.b16 %v446
        %v703 = vunpack.c.l.b16 %v447
        %v704 = vunpack.c.l.b16 %v448
        %v705 = vunpack.c.l.b16 %v449
        %v706 = vunpack.c.l.b16 %v450
        %v707 = vunpack.c.l.b16 %v451
        %v708 = vunpack.c.l.b16 %v452
        %v709 = vunpack.c.l.b16 %v453
        %v710 = vunpack.c.l.b16 %v454
        %v711 = vunpack.c.l.b16 %v455
        %v712 = vunpack.c.l.b16 %v456
        %v713 = vunpack.c.l.b16 %v457
        %v714 = vunpack.c.l.b16 %v458
        %v715 = vunpack.c.l.b16 %v459
        %v716 = vunpack.c.l.b16 %v460
        %v717 = vunpack.c.l.b16 %v461
        %v718 = vunpack.c.l.b16 %v462
        %v719 = vunpack.c.l.b16 %v463
        %v720 = vunpack.c.l.b16 %v464
        %v721 = vunpack.c.l.b16 %v465
        %v722 = vunpack.c.l.b16 %v466
        %v723 = vunpack.c.l.b16 %v467
        %v724 = vunpack.c.l.b16 %v468
        %v725 = vunpack.c.l.b16 %v469
        %v726 = vunpack.c.l.b16 %v470
        %v727 = vunpack.c.l.b16 %v471
        %v728 = vunpack.c.l.b16 %v472
        %v729 = vunpack.c.l.b16 %v473
        %v730 = vunpack.c.l.b16 %v474
        %v731 = vunpack.c.l.b16 %v475
        %v732 = vunpack.c.l.b16 %v476
        %v733 = vunpack.c.l.b16 %v477
        %v734 = vunpack.c.l.b16 %v478
        %v735 = vunpack.c.l.b16 %v479
        %v736 = vunpack.c.l.b16 %v480
        %v737 = vunpack.c.l.b16 %v481
        %v738 = vunpack.c.l.b16 %v482
        %v739 = vunpack.c.l.b16 %v483
        %v740 = vunpack.c.l.b16 %v484
        %v741 = vunpack.c.l.b16 %v485
        %v742 = vunpack.c.l.b16 %v486
        %v743 = vunpack.c.l.b16 %v487
        %v744 = vunpack.c.l.b16 %v488
        %v745 = vunpack.c.l.b16 %v489
        %v746 = vunpack.c.l.b16 %v490
        %v747 = vpack.c.b16 %v620, %v619
        %v748 = vpack.c.b16 %v622, %v621
        %v749 = vpack.c.b16 %v624, %v623
        %v750 = vpack.c.b16 %v626, %v625
        %v751 = vpack.c.b16 %v628, %v627
        %v752 = vpack.c.b16 %v630, %v629
        %v753 = vpack.c.b16 %v632, %v631
        %v754 = vpack.c.b16 %v634, %v633
        %v755 = vpack.c.b16 %v636, %v635
        %v756 = vpack.c.b16 %v638, %v637
        %v757 = vpack.c.b16 %v640, %v639
        %v758 = vpack.c.b16 %v642, %v641
        %v759 = vpack.c.b16 %v644, %v643
        %v760 = vpack.c.b16 %v646, %v645
        %v761 = vpack.c.b16 %v648, %v647
        %v762 = vpack.c.b16 %v650, %v649
        %v763 = vpack.c.b16 %v652, %v651
        %v764 = vpack.c.b16 %v654, %v653
        %v765 = vpack.c.b16 %v656, %v655
        %v766 = vpack.c.b16 %v658, %v657
        %v767 = vpack.c.b16 %v660, %v659
        %v768 = vpack.c.b16 %v662, %v661
        %v769 = vpack.c.b16 %v664, %v663
        %v770 = vpack.c.b16 %v666, %v665
        %v771 = vpack.c.b16 %v668, %v667
        %v772 = vpack.c.b16 %v670, %v669
        %v773 = vpack.c.b16 %v672, %v671
        %v774 = vpack.c.b16 %v674, %v673
        %v775 = vpack.c.b16 %v676, %v675
        %v776 = vpack.c.b16 %v678, %v677
        %v777 = vpack.c.b16 %v680, %v679
        %v778 = vpack.c.b16 %v682, %v681
        %v779 = vpack.c.b16 %v684, %v683
        %v780 = vpack.c.b16 %v686, %v685
        %v781 = vpack.c.b16 %v688, %v687
        %v782 = vpack.c.b16 %v690, %v689
        %v783 = vpack.c.b16 %v692, %v691
        %v784 = vpack.c.b16 %v694, %v693
        %v785 = vpack.c.b16 %v696, %v695
        %v786 = vpack.c.b16 %v698, %v697
        %v787 = vpack.c.b16 %v700, %v699
        %v788 = vpack.c.b16 %v702, %v701
        %v789 = vpack.c.b16 %v704, %v703
        %v790 = vpack.c.b16 %v706, %v705
        %v791 = vpack.c.b16 %v708, %v707
        %v792 = vpack.c.b16 %v710, %v709
        %v793 = vpack.c.b16 %v712, %v711
        %v794 = vpack.c.b16 %v714, %v713
        %v795 = vpack.c.b16 %v716, %v715
        %v796 = vpack.c.b16 %v718, %v717
        %v797 = vpack.c.b16 %v720, %v719
        %v798 = vpack.c.b16 %v722, %v721
        %v799 = vpack.c.b16 %v724, %v723
        %v800 = vpack.c.b16 %v726, %v725
        %v801 = vpack.c.b16 %v728, %v727
        %v802 = vpack.c.b16 %v730, %v729
        %v803 = vpack.c.b16 %v732, %v731
        %v804 = vpack.c.b16 %v734, %v733
        %v805 = vpack.c.b16 %v736, %v735
        %v806 = vpack.c.b16 %v738, %v737
        %v807 = vpack.c.b16 %v740, %v739
        %v808 = vpack.c.b16 %v742, %v741
        %v809 = vpack.c.b16 %v744, %v743
        %v810 = vpack.c.b16 %v746, %v745
        %875 = vmatpush.bf16.msra.mxu0 %v754
        %876 = vmatpush.bf16.msra.mxu0 %v753
        %877 = vmatpush.bf16.msra.mxu0 %v752
        %878 = vmatpush.bf16.msra.mxu0 %v751
        %879 = vmatpush.bf16.msra.mxu0 %v750
        %880 = vmatpush.bf16.msra.mxu0 %v749
        %881 = vmatpush.bf16.msra.mxu0 %v748
        %882 = vmatpush.bf16.msra.mxu0 %v747
        %883 = vmatmul.bf16.gmra.mxu0 %v354
        %v884 = vpop.f32.mrf.mxu0
        %v885 = vadd.f32 0.0, %v884
        %v886 = vpop.f32.mrf.mxu0
        %887 = vdwg.mxu0
        %888 = vmatpush.bf16.msra.mxu0 %v762
        %889 = vmatpush.bf16.msra.mxu0 %v761
        %890 = vmatpush.bf16.msra.mxu0 %v760
        %891 = vmatpush.bf16.msra.mxu0 %v759
        %892 = vmatpush.bf16.msra.mxu0 %v758
        %893 = vmatpush.bf16.msra.mxu0 %v757
        %894 = vmatpush.bf16.msra.mxu0 %v756
        %895 = vmatpush.bf16.msra.mxu0 %v755
        %896 = vmatmul.bf16.gmra.mxu0 %v355
        %v897 = vpop.f32.mrf.mxu0
        %v898 = vadd.f32 %v885, %v897
        %v899 = vpop.f32.mrf.mxu0
        %900 = vdwg.mxu0
        %901 = vmatpush.bf16.msra.mxu0 %v770
        %902 = vmatpush.bf16.msra.mxu0 %v769
        %903 = vmatpush.bf16.msra.mxu0 %v768
        %904 = vmatpush.bf16.msra.mxu0 %v767
        %905 = vmatpush.bf16.msra.mxu0 %v766
        %906 = vmatpush.bf16.msra.mxu0 %v765
        %907 = vmatpush.bf16.msra.mxu0 %v764
        %908 = vmatpush.bf16.msra.mxu0 %v763
        %909 = vmatmul.bf16.gmra.mxu0 %v356
        %v910 = vpop.f32.mrf.mxu0
        %v911 = vadd.f32 %v898, %v910
        %v912 = vpop.f32.mrf.mxu0
        %913 = vdwg.mxu0
        %914 = vmatpush.bf16.msra.mxu0 %v778
        %915 = vmatpush.bf16.msra.mxu0 %v777
        %916 = vmatpush.bf16.msra.mxu0 %v776
        %917 = vmatpush.bf16.msra.mxu0 %v775
        %918 = vmatpush.bf16.msra.mxu0 %v774
        %919 = vmatpush.bf16.msra.mxu0 %v773
        %920 = vmatpush.bf16.msra.mxu0 %v772
        %921 = vmatpush.bf16.msra.mxu0 %v771
        %922 = vmatmul.bf16.gmra.mxu0 %v357
        %v923 = vpop.f32.mrf.mxu0
        %v924 = vadd.f32 %v911, %v923
        %v925 = vpop.f32.mrf.mxu0
        %926 = vdwg.mxu0
        %927 = vmatpush.bf16.msra.mxu0 %v786
        %928 = vmatpush.bf16.msra.mxu0 %v785
        %929 = vmatpush.bf16.msra.mxu0 %v784
        %930 = vmatpush.bf16.msra.mxu0 %v783
        %931 = vmatpush.bf16.msra.mxu0 %v782
        %932 = vmatpush.bf16.msra.mxu0 %v781
        %933 = vmatpush.bf16.msra.mxu0 %v780
        %934 = vmatpush.bf16.msra.mxu0 %v779
        %935 = vmatmul.bf16.gmra.mxu0 %v358
        %v936 = vpop.f32.mrf.mxu0
        %v937 = vadd.f32 %v924, %v936
        %v938 = vpop.f32.mrf.mxu0
        %939 = vdwg.mxu0
        %940 = vmatpush.bf16.msra.mxu0 %v794
        %941 = vmatpush.bf16.msra.mxu0 %v793
        %942 = vmatpush.bf16.msra.mxu0 %v792
        %943 = vmatpush.bf16.msra.mxu0 %v791
        %944 = vmatpush.bf16.msra.mxu0 %v790
        %945 = vmatpush.bf16.msra.mxu0 %v789
        %946 = vmatpush.bf16.msra.mxu0 %v788
        %947 = vmatpush.bf16.msra.mxu0 %v787
        %948 = vmatmul.bf16.gmra.mxu0 %v359
        %v949 = vpop.f32.mrf.mxu0
        %v950 = vadd.f32 %v937, %v949
        %v951 = vpop.f32.mrf.mxu0
        %952 = vdwg.mxu0
        %953 = vmatpush.bf16.msra.mxu0 %v802
        %954 = vmatpush.bf16.msra.mxu0 %v801
        %955 = vmatpush.bf16.msra.mxu0 %v800
        %956 = vmatpush.bf16.msra.mxu0 %v799
        %957 = vmatpush.bf16.msra.mxu0 %v798
        %958 = vmatpush.bf16.msra.mxu0 %v797
        %959 = vmatpush.bf16.msra.mxu0 %v796
        %960 = vmatpush.bf16.msra.mxu0 %v795
        %961 = vmatmul.bf16.gmra.mxu0 %v360
        %v962 = vpop.f32.mrf.mxu0
        %v963 = vadd.f32 %v950, %v962
        %v964 = vpop.f32.mrf.mxu0
        %965 = vdwg.mxu0
        %966 = vmatpush.bf16.msra.mxu0 %v810
        %967 = vmatpush.bf16.msra.mxu0 %v809
        %968 = vmatpush.bf16.msra.mxu0 %v808
        %969 = vmatpush.bf16.msra.mxu0 %v807
        %970 = vmatpush.bf16.msra.mxu0 %v806
        %971 = vmatpush.bf16.msra.mxu0 %v805
        %972 = vmatpush.bf16.msra.mxu0 %v804
        %973 = vmatpush.bf16.msra.mxu0 %v803
        %974 = vmatmul.bf16.gmra.mxu0 %v361
        %v975 = vpop.f32.mrf.mxu0
        %v976 = vadd.f32 %v963, %v975
        %v977 = vpop.f32.mrf.mxu0
        %978 = vdwg.mxu0
        %v979 = vadd.f32 %v362, %v976
        %980 = vst [vmem:[#allocation2] sm:$0x3] %v979
        %s981 = scalar_lea.vmem [#allocation2], 2
        %v982 = vld [vmem:[%s981] sm:$0x3]
        %s983 = scalar_lea.vmem %s282, 512 [#allocation6]
        %v984 = vld [vmem:[%s983] sm:$0xf]
        %v985 = vld [vmem:[%s983 + $0x4] sm:$0xf]
        %v986 = vld [vmem:[%s983 + $0x8] sm:$0xf]
        %v987 = vld [vmem:[%s983 + $0xc] sm:$0xf]
        %v988 = vld [vmem:[%s983 + $0x10] sm:$0xf]
        %v989 = vld [vmem:[%s983 + $0x14] sm:$0xf]
        %v990 = vld [vmem:[%s983 + $0x18] sm:$0xf]
        %v991 = vld [vmem:[%s983 + $0x1c] sm:$0xf]
        %v992 = vld [vmem:[%s983 + $0x20] sm:$0xf]
        %v993 = vld [vmem:[%s983 + $0x24] sm:$0xf]
        %v994 = vld [vmem:[%s983 + $0x28] sm:$0xf]
        %v995 = vld [vmem:[%s983 + $0x2c] sm:$0xf]
        %v996 = vld [vmem:[%s983 + $0x30] sm:$0xf]
        %v997 = vld [vmem:[%s983 + $0x34] sm:$0xf]
        %v998 = vld [vmem:[%s983 + $0x38] sm:$0xf]
        %v999 = vld [vmem:[%s983 + $0x3c] sm:$0xf]
        %v1000 = vld [vmem:[%s983 + $0x40] sm:$0xf]
        %v1001 = vld [vmem:[%s983 + $0x44] sm:$0xf]
        %v1002 = vld [vmem:[%s983 + $0x48] sm:$0xf]
        %v1003 = vld [vmem:[%s983 + $0x4c] sm:$0xf]
        %v1004 = vld [vmem:[%s983 + $0x50] sm:$0xf]
        %v1005 = vld [vmem:[%s983 + $0x54] sm:$0xf]
        %v1006 = vld [vmem:[%s983 + $0x58] sm:$0xf]
        %v1007 = vld [vmem:[%s983 + $0x5c] sm:$0xf]
        %v1008 = vld [vmem:[%s983 + $0x60] sm:$0xf]
        %v1009 = vld [vmem:[%s983 + $0x64] sm:$0xf]
        %v1010 = vld [vmem:[%s983 + $0x68] sm:$0xf]
        %v1011 = vld [vmem:[%s983 + $0x6c] sm:$0xf]
        %v1012 = vld [vmem:[%s983 + $0x70] sm:$0xf]
        %v1013 = vld [vmem:[%s983 + $0x74] sm:$0xf]
        %v1014 = vld [vmem:[%s983 + $0x78] sm:$0xf]
        %v1015 = vld [vmem:[%s983 + $0x7c] sm:$0xf]
        %v1016 = vld [vmem:[%s983 + $0x80] sm:$0xf]
        %v1017 = vld [vmem:[%s983 + $0x84] sm:$0xf]
        %v1018 = vld [vmem:[%s983 + $0x88] sm:$0xf]
        %v1019 = vld [vmem:[%s983 + $0x8c] sm:$0xf]
        %v1020 = vld [vmem:[%s983 + $0x90] sm:$0xf]
        %v1021 = vld [vmem:[%s983 + $0x94] sm:$0xf]
        %v1022 = vld [vmem:[%s983 + $0x98] sm:$0xf]
        %v1023 = vld [vmem:[%s983 + $0x9c] sm:$0xf]
        %v1024 = vld [vmem:[%s983 + $0xa0] sm:$0xf]
        %v1025 = vld [vmem:[%s983 + $0xa4] sm:$0xf]
        %v1026 = vld [vmem:[%s983 + $0xa8] sm:$0xf]
        %v1027 = vld [vmem:[%s983 + $0xac] sm:$0xf]
        %v1028 = vld [vmem:[%s983 + $0xb0] sm:$0xf]
        %v1029 = vld [vmem:[%s983 + $0xb4] sm:$0xf]
        %v1030 = vld [vmem:[%s983 + $0xb8] sm:$0xf]
        %v1031 = vld [vmem:[%s983 + $0xbc] sm:$0xf]
        %v1032 = vld [vmem:[%s983 + $0xc0] sm:$0xf]
        %v1033 = vld [vmem:[%s983 + $0xc4] sm:$0xf]
        %v1034 = vld [vmem:[%s983 + $0xc8] sm:$0xf]
        %v1035 = vld [vmem:[%s983 + $0xcc] sm:$0xf]
        %v1036 = vld [vmem:[%s983 + $0xd0] sm:$0xf]
        %v1037 = vld [vmem:[%s983 + $0xd4] sm:$0xf]
        %v1038 = vld [vmem:[%s983 + $0xd8] sm:$0xf]
        %v1039 = vld [vmem:[%s983 + $0xdc] sm:$0xf]
        %v1040 = vld [vmem:[%s983 + $0xe0] sm:$0xf]
        %v1041 = vld [vmem:[%s983 + $0xe4] sm:$0xf]
        %v1042 = vld [vmem:[%s983 + $0xe8] sm:$0xf]
        %v1043 = vld [vmem:[%s983 + $0xec] sm:$0xf]
        %v1044 = vld [vmem:[%s983 + $0xf0] sm:$0xf]
        %v1045 = vld [vmem:[%s983 + $0xf4] sm:$0xf]
        %v1046 = vld [vmem:[%s983 + $0xf8] sm:$0xf]
        %v1047 = vld [vmem:[%s983 + $0xfc] sm:$0xf]
        %v1048 = vld [vmem:[%s983 + $0x100] sm:$0xf]
        %v1049 = vld [vmem:[%s983 + $0x104] sm:$0xf]
        %v1050 = vld [vmem:[%s983 + $0x108] sm:$0xf]
        %v1051 = vld [vmem:[%s983 + $0x10c] sm:$0xf]
        %v1052 = vld [vmem:[%s983 + $0x110] sm:$0xf]
        %v1053 = vld [vmem:[%s983 + $0x114] sm:$0xf]
        %v1054 = vld [vmem:[%s983 + $0x118] sm:$0xf]
        %v1055 = vld [vmem:[%s983 + $0x11c] sm:$0xf]
        %v1056 = vld [vmem:[%s983 + $0x120] sm:$0xf]
        %v1057 = vld [vmem:[%s983 + $0x124] sm:$0xf]
        %v1058 = vld [vmem:[%s983 + $0x128] sm:$0xf]
        %v1059 = vld [vmem:[%s983 + $0x12c] sm:$0xf]
        %v1060 = vld [vmem:[%s983 + $0x130] sm:$0xf]
        %v1061 = vld [vmem:[%s983 + $0x134] sm:$0xf]
        %v1062 = vld [vmem:[%s983 + $0x138] sm:$0xf]
        %v1063 = vld [vmem:[%s983 + $0x13c] sm:$0xf]
        %v1064 = vld [vmem:[%s983 + $0x140] sm:$0xf]
        %v1065 = vld [vmem:[%s983 + $0x144] sm:$0xf]
        %v1066 = vld [vmem:[%s983 + $0x148] sm:$0xf]
        %v1067 = vld [vmem:[%s983 + $0x14c] sm:$0xf]
        %v1068 = vld [vmem:[%s983 + $0x150] sm:$0xf]
        %v1069 = vld [vmem:[%s983 + $0x154] sm:$0xf]
        %v1070 = vld [vmem:[%s983 + $0x158] sm:$0xf]
        %v1071 = vld [vmem:[%s983 + $0x15c] sm:$0xf]
        %v1072 = vld [vmem:[%s983 + $0x160] sm:$0xf]
        %v1073 = vld [vmem:[%s983 + $0x164] sm:$0xf]
        %v1074 = vld [vmem:[%s983 + $0x168] sm:$0xf]
        %v1075 = vld [vmem:[%s983 + $0x16c] sm:$0xf]
        %v1076 = vld [vmem:[%s983 + $0x170] sm:$0xf]
        %v1077 = vld [vmem:[%s983 + $0x174] sm:$0xf]
        %v1078 = vld [vmem:[%s983 + $0x178] sm:$0xf]
        %v1079 = vld [vmem:[%s983 + $0x17c] sm:$0xf]
        %v1080 = vld [vmem:[%s983 + $0x180] sm:$0xf]
        %v1081 = vld [vmem:[%s983 + $0x184] sm:$0xf]
        %v1082 = vld [vmem:[%s983 + $0x188] sm:$0xf]
        %v1083 = vld [vmem:[%s983 + $0x18c] sm:$0xf]
        %v1084 = vld [vmem:[%s983 + $0x190] sm:$0xf]
        %v1085 = vld [vmem:[%s983 + $0x194] sm:$0xf]
        %v1086 = vld [vmem:[%s983 + $0x198] sm:$0xf]
        %v1087 = vld [vmem:[%s983 + $0x19c] sm:$0xf]
        %v1088 = vld [vmem:[%s983 + $0x1a0] sm:$0xf]
        %v1089 = vld [vmem:[%s983 + $0x1a4] sm:$0xf]
        %v1090 = vld [vmem:[%s983 + $0x1a8] sm:$0xf]
        %v1091 = vld [vmem:[%s983 + $0x1ac] sm:$0xf]
        %v1092 = vld [vmem:[%s983 + $0x1b0] sm:$0xf]
        %v1093 = vld [vmem:[%s983 + $0x1b4] sm:$0xf]
        %v1094 = vld [vmem:[%s983 + $0x1b8] sm:$0xf]
        %v1095 = vld [vmem:[%s983 + $0x1bc] sm:$0xf]
        %v1096 = vld [vmem:[%s983 + $0x1c0] sm:$0xf]
        %v1097 = vld [vmem:[%s983 + $0x1c4] sm:$0xf]
        %v1098 = vld [vmem:[%s983 + $0x1c8] sm:$0xf]
        %v1099 = vld [vmem:[%s983 + $0x1cc] sm:$0xf]
        %v1100 = vld [vmem:[%s983 + $0x1d0] sm:$0xf]
        %v1101 = vld [vmem:[%s983 + $0x1d4] sm:$0xf]
        %v1102 = vld [vmem:[%s983 + $0x1d8] sm:$0xf]
        %v1103 = vld [vmem:[%s983 + $0x1dc] sm:$0xf]
        %v1104 = vld [vmem:[%s983 + $0x1e0] sm:$0xf]
        %v1105 = vld [vmem:[%s983 + $0x1e4] sm:$0xf]
        %v1106 = vld [vmem:[%s983 + $0x1e8] sm:$0xf]
        %v1107 = vld [vmem:[%s983 + $0x1ec] sm:$0xf]
        %v1108 = vld [vmem:[%s983 + $0x1f0] sm:$0xf]
        %v1109 = vld [vmem:[%s983 + $0x1f4] sm:$0xf]
        %v1110 = vld [vmem:[%s983 + $0x1f8] sm:$0xf]
        %v1111 = vld [vmem:[%s983 + $0x1fc] sm:$0xf]
        %v1240 = vunpack.c.l.b16 %v984
        %v1241 = vunpack.c.l.b16 %v985
        %v1242 = vunpack.c.l.b16 %v986
        %v1243 = vunpack.c.l.b16 %v987
        %v1244 = vunpack.c.l.b16 %v988
        %v1245 = vunpack.c.l.b16 %v989
        %v1246 = vunpack.c.l.b16 %v990
        %v1247 = vunpack.c.l.b16 %v991
        %v1248 = vunpack.c.l.b16 %v992
        %v1249 = vunpack.c.l.b16 %v993
        %v1250 = vunpack.c.l.b16 %v994
        %v1251 = vunpack.c.l.b16 %v995
        %v1252 = vunpack.c.l.b16 %v996
        %v1253 = vunpack.c.l.b16 %v997
        %v1254 = vunpack.c.l.b16 %v998
        %v1255 = vunpack.c.l.b16 %v999
        %v1256 = vunpack.c.l.b16 %v1000
        %v1257 = vunpack.c.l.b16 %v1001
        %v1258 = vunpack.c.l.b16 %v1002
        %v1259 = vunpack.c.l.b16 %v1003
        %v1260 = vunpack.c.l.b16 %v1004
        %v1261 = vunpack.c.l.b16 %v1005
        %v1262 = vunpack.c.l.b16 %v1006
        %v1263 = vunpack.c.l.b16 %v1007
        %v1264 = vunpack.c.l.b16 %v1008
        %v1265 = vunpack.c.l.b16 %v1009
        %v1266 = vunpack.c.l.b16 %v1010
        %v1267 = vunpack.c.l.b16 %v1011
        %v1268 = vunpack.c.l.b16 %v1012
        %v1269 = vunpack.c.l.b16 %v1013
        %v1270 = vunpack.c.l.b16 %v1014
        %v1271 = vunpack.c.l.b16 %v1015
        %v1272 = vunpack.c.l.b16 %v1016
        %v1273 = vunpack.c.l.b16 %v1017
        %v1274 = vunpack.c.l.b16 %v1018
        %v1275 = vunpack.c.l.b16 %v1019
        %v1276 = vunpack.c.l.b16 %v1020
        %v1277 = vunpack.c.l.b16 %v1021
        %v1278 = vunpack.c.l.b16 %v1022
        %v1279 = vunpack.c.l.b16 %v1023
        %v1280 = vunpack.c.l.b16 %v1024
        %v1281 = vunpack.c.l.b16 %v1025
        %v1282 = vunpack.c.l.b16 %v1026
        %v1283 = vunpack.c.l.b16 %v1027
        %v1284 = vunpack.c.l.b16 %v1028
        %v1285 = vunpack.c.l.b16 %v1029
        %v1286 = vunpack.c.l.b16 %v1030
        %v1287 = vunpack.c.l.b16 %v1031
        %v1288 = vunpack.c.l.b16 %v1032
        %v1289 = vunpack.c.l.b16 %v1033
        %v1290 = vunpack.c.l.b16 %v1034
        %v1291 = vunpack.c.l.b16 %v1035
        %v1292 = vunpack.c.l.b16 %v1036
        %v1293 = vunpack.c.l.b16 %v1037
        %v1294 = vunpack.c.l.b16 %v1038
        %v1295 = vunpack.c.l.b16 %v1039
        %v1296 = vunpack.c.l.b16 %v1040
        %v1297 = vunpack.c.l.b16 %v1041
        %v1298 = vunpack.c.l.b16 %v1042
        %v1299 = vunpack.c.l.b16 %v1043
        %v1300 = vunpack.c.l.b16 %v1044
        %v1301 = vunpack.c.l.b16 %v1045
        %v1302 = vunpack.c.l.b16 %v1046
        %v1303 = vunpack.c.l.b16 %v1047
        %v1304 = vunpack.c.l.b16 %v1048
        %v1305 = vunpack.c.l.b16 %v1049
        %v1306 = vunpack.c.l.b16 %v1050
        %v1307 = vunpack.c.l.b16 %v1051
        %v1308 = vunpack.c.l.b16 %v1052
        %v1309 = vunpack.c.l.b16 %v1053
        %v1310 = vunpack.c.l.b16 %v1054
        %v1311 = vunpack.c.l.b16 %v1055
        %v1312 = vunpack.c.l.b16 %v1056
        %v1313 = vunpack.c.l.b16 %v1057
        %v1314 = vunpack.c.l.b16 %v1058
        %v1315 = vunpack.c.l.b16 %v1059
        %v1316 = vunpack.c.l.b16 %v1060
        %v1317 = vunpack.c.l.b16 %v1061
        %v1318 = vunpack.c.l.b16 %v1062
        %v1319 = vunpack.c.l.b16 %v1063
        %v1320 = vunpack.c.l.b16 %v1064
        %v1321 = vunpack.c.l.b16 %v1065
        %v1322 = vunpack.c.l.b16 %v1066
        %v1323 = vunpack.c.l.b16 %v1067
        %v1324 = vunpack.c.l.b16 %v1068
        %v1325 = vunpack.c.l.b16 %v1069
        %v1326 = vunpack.c.l.b16 %v1070
        %v1327 = vunpack.c.l.b16 %v1071
        %v1328 = vunpack.c.l.b16 %v1072
        %v1329 = vunpack.c.l.b16 %v1073
        %v1330 = vunpack.c.l.b16 %v1074
        %v1331 = vunpack.c.l.b16 %v1075
        %v1332 = vunpack.c.l.b16 %v1076
        %v1333 = vunpack.c.l.b16 %v1077
        %v1334 = vunpack.c.l.b16 %v1078
        %v1335 = vunpack.c.l.b16 %v1079
        %v1336 = vunpack.c.l.b16 %v1080
        %v1337 = vunpack.c.l.b16 %v1081
        %v1338 = vunpack.c.l.b16 %v1082
        %v1339 = vunpack.c.l.b16 %v1083
        %v1340 = vunpack.c.l.b16 %v1084
        %v1341 = vunpack.c.l.b16 %v1085
        %v1342 = vunpack.c.l.b16 %v1086
        %v1343 = vunpack.c.l.b16 %v1087
        %v1344 = vunpack.c.l.b16 %v1088
        %v1345 = vunpack.c.l.b16 %v1089
        %v1346 = vunpack.c.l.b16 %v1090
        %v1347 = vunpack.c.l.b16 %v1091
        %v1348 = vunpack.c.l.b16 %v1092
        %v1349 = vunpack.c.l.b16 %v1093
        %v1350 = vunpack.c.l.b16 %v1094
        %v1351 = vunpack.c.l.b16 %v1095
        %v1352 = vunpack.c.l.b16 %v1096
        %v1353 = vunpack.c.l.b16 %v1097
        %v1354 = vunpack.c.l.b16 %v1098
        %v1355 = vunpack.c.l.b16 %v1099
        %v1356 = vunpack.c.l.b16 %v1100
        %v1357 = vunpack.c.l.b16 %v1101
        %v1358 = vunpack.c.l.b16 %v1102
        %v1359 = vunpack.c.l.b16 %v1103
        %v1360 = vunpack.c.l.b16 %v1104
        %v1361 = vunpack.c.l.b16 %v1105
        %v1362 = vunpack.c.l.b16 %v1106
        %v1363 = vunpack.c.l.b16 %v1107
        %v1364 = vunpack.c.l.b16 %v1108
        %v1365 = vunpack.c.l.b16 %v1109
        %v1366 = vunpack.c.l.b16 %v1110
        %v1367 = vunpack.c.l.b16 %v1111
        %v1368 = vpack.c.b16 %v1241, %v1240
        %v1369 = vpack.c.b16 %v1243, %v1242
        %v1370 = vpack.c.b16 %v1245, %v1244
        %v1371 = vpack.c.b16 %v1247, %v1246
        %v1372 = vpack.c.b16 %v1249, %v1248
        %v1373 = vpack.c.b16 %v1251, %v1250
        %v1374 = vpack.c.b16 %v1253, %v1252
        %v1375 = vpack.c.b16 %v1255, %v1254
        %v1376 = vpack.c.b16 %v1257, %v1256
        %v1377 = vpack.c.b16 %v1259, %v1258
        %v1378 = vpack.c.b16 %v1261, %v1260
        %v1379 = vpack.c.b16 %v1263, %v1262
        %v1380 = vpack.c.b16 %v1265, %v1264
        %v1381 = vpack.c.b16 %v1267, %v1266
        %v1382 = vpack.c.b16 %v1269, %v1268
        %v1383 = vpack.c.b16 %v1271, %v1270
        %v1384 = vpack.c.b16 %v1273, %v1272
        %v1385 = vpack.c.b16 %v1275, %v1274
        %v1386 = vpack.c.b16 %v1277, %v1276
        %v1387 = vpack.c.b16 %v1279, %v1278
        %v1388 = vpack.c.b16 %v1281, %v1280
        %v1389 = vpack.c.b16 %v1283, %v1282
        %v1390 = vpack.c.b16 %v1285, %v1284
        %v1391 = vpack.c.b16 %v1287, %v1286
        %v1392 = vpack.c.b16 %v1289, %v1288
        %v1393 = vpack.c.b16 %v1291, %v1290
        %v1394 = vpack.c.b16 %v1293, %v1292
        %v1395 = vpack.c.b16 %v1295, %v1294
        %v1396 = vpack.c.b16 %v1297, %v1296
        %v1397 = vpack.c.b16 %v1299, %v1298
        %v1398 = vpack.c.b16 %v1301, %v1300
        %v1399 = vpack.c.b16 %v1303, %v1302
        %v1400 = vpack.c.b16 %v1305, %v1304
        %v1401 = vpack.c.b16 %v1307, %v1306
        %v1402 = vpack.c.b16 %v1309, %v1308
        %v1403 = vpack.c.b16 %v1311, %v1310
        %v1404 = vpack.c.b16 %v1313, %v1312
        %v1405 = vpack.c.b16 %v1315, %v1314
        %v1406 = vpack.c.b16 %v1317, %v1316
        %v1407 = vpack.c.b16 %v1319, %v1318
        %v1408 = vpack.c.b16 %v1321, %v1320
        %v1409 = vpack.c.b16 %v1323, %v1322
        %v1410 = vpack.c.b16 %v1325, %v1324
        %v1411 = vpack.c.b16 %v1327, %v1326
        %v1412 = vpack.c.b16 %v1329, %v1328
        %v1413 = vpack.c.b16 %v1331, %v1330
        %v1414 = vpack.c.b16 %v1333, %v1332
        %v1415 = vpack.c.b16 %v1335, %v1334
        %v1416 = vpack.c.b16 %v1337, %v1336
        %v1417 = vpack.c.b16 %v1339, %v1338
        %v1418 = vpack.c.b16 %v1341, %v1340
        %v1419 = vpack.c.b16 %v1343, %v1342
        %v1420 = vpack.c.b16 %v1345, %v1344
        %v1421 = vpack.c.b16 %v1347, %v1346
        %v1422 = vpack.c.b16 %v1349, %v1348
        %v1423 = vpack.c.b16 %v1351, %v1350
        %v1424 = vpack.c.b16 %v1353, %v1352
        %v1425 = vpack.c.b16 %v1355, %v1354
        %v1426 = vpack.c.b16 %v1357, %v1356
        %v1427 = vpack.c.b16 %v1359, %v1358
        %v1428 = vpack.c.b16 %v1361, %v1360
        %v1429 = vpack.c.b16 %v1363, %v1362
        %v1430 = vpack.c.b16 %v1365, %v1364
        %v1431 = vpack.c.b16 %v1367, %v1366
        %1496 = vmatpush.bf16.msra.mxu0 %v1375
        %1497 = vmatpush.bf16.msra.mxu0 %v1374
        %1498 = vmatpush.bf16.msra.mxu0 %v1373
        %1499 = vmatpush.bf16.msra.mxu0 %v1372
        %1500 = vmatpush.bf16.msra.mxu0 %v1371
        %1501 = vmatpush.bf16.msra.mxu0 %v1370
        %1502 = vmatpush.bf16.msra.mxu0 %v1369
        %1503 = vmatpush.bf16.msra.mxu0 %v1368
        %1504 = vmatmul.bf16.gmra.mxu0 %v354
        %v1505 = vpop.f32.mrf.mxu0
        %v1506 = vadd.f32 0.0, %v1505
        %v1507 = vpop.f32.mrf.mxu0
        %1508 = vdwg.mxu0
        %1509 = vmatpush.bf16.msra.mxu0 %v1383
        %1510 = vmatpush.bf16.msra.mxu0 %v1382
        %1511 = vmatpush.bf16.msra.mxu0 %v1381
        %1512 = vmatpush.bf16.msra.mxu0 %v1380
        %1513 = vmatpush.bf16.msra.mxu0 %v1379
        %1514 = vmatpush.bf16.msra.mxu0 %v1378
        %1515 = vmatpush.bf16.msra.mxu0 %v1377
        %1516 = vmatpush.bf16.msra.mxu0 %v1376
        %1517 = vmatmul.bf16.gmra.mxu0 %v355
        %v1518 = vpop.f32.mrf.mxu0
        %v1519 = vadd.f32 %v1506, %v1518
        %v1520 = vpop.f32.mrf.mxu0
        %1521 = vdwg.mxu0
        %1522 = vmatpush.bf16.msra.mxu0 %v1391
        %1523 = vmatpush.bf16.msra.mxu0 %v1390
        %1524 = vmatpush.bf16.msra.mxu0 %v1389
        %1525 = vmatpush.bf16.msra.mxu0 %v1388
        %1526 = vmatpush.bf16.msra.mxu0 %v1387
        %1527 = vmatpush.bf16.msra.mxu0 %v1386
        %1528 = vmatpush.bf16.msra.mxu0 %v1385
        %1529 = vmatpush.bf16.msra.mxu0 %v1384
        %1530 = vmatmul.bf16.gmra.mxu0 %v356
        %v1531 = vpop.f32.mrf.mxu0
        %v1532 = vadd.f32 %v1519, %v1531
        %v1533 = vpop.f32.mrf.mxu0
        %1534 = vdwg.mxu0
        %1535 = vmatpush.bf16.msra.mxu0 %v1399
        %1536 = vmatpush.bf16.msra.mxu0 %v1398
        %1537 = vmatpush.bf16.msra.mxu0 %v1397
        %1538 = vmatpush.bf16.msra.mxu0 %v1396
        %1539 = vmatpush.bf16.msra.mxu0 %v1395
        %1540 = vmatpush.bf16.msra.mxu0 %v1394
        %1541 = vmatpush.bf16.msra.mxu0 %v1393
        %1542 = vmatpush.bf16.msra.mxu0 %v1392
        %1543 = vmatmul.bf16.gmra.mxu0 %v357
        %v1544 = vpop.f32.mrf.mxu0
        %v1545 = vadd.f32 %v1532, %v1544
        %v1546 = vpop.f32.mrf.mxu0
        %1547 = vdwg.mxu0
        %1548 = vmatpush.bf16.msra.mxu0 %v1407
        %1549 = vmatpush.bf16.msra.mxu0 %v1406
        %1550 = vmatpush.bf16.msra.mxu0 %v1405
        %1551 = vmatpush.bf16.msra.mxu0 %v1404
        %1552 = vmatpush.bf16.msra.mxu0 %v1403
        %1553 = vmatpush.bf16.msra.mxu0 %v1402
        %1554 = vmatpush.bf16.msra.mxu0 %v1401
        %1555 = vmatpush.bf16.msra.mxu0 %v1400
        %1556 = vmatmul.bf16.gmra.mxu0 %v358
        %v1557 = vpop.f32.mrf.mxu0
        %v1558 = vadd.f32 %v1545, %v1557
        %v1559 = vpop.f32.mrf.mxu0
        %1560 = vdwg.mxu0
        %1561 = vmatpush.bf16.msra.mxu0 %v1415
        %1562 = vmatpush.bf16.msra.mxu0 %v1414
        %1563 = vmatpush.bf16.msra.mxu0 %v1413
        %1564 = vmatpush.bf16.msra.mxu0 %v1412
        %1565 = vmatpush.bf16.msra.mxu0 %v1411
        %1566 = vmatpush.bf16.msra.mxu0 %v1410
        %1567 = vmatpush.bf16.msra.mxu0 %v1409
        %1568 = vmatpush.bf16.msra.mxu0 %v1408
        %1569 = vmatmul.bf16.gmra.mxu0 %v359
        %v1570 = vpop.f32.mrf.mxu0
        %v1571 = vadd.f32 %v1558, %v1570
        %v1572 = vpop.f32.mrf.mxu0
        %1573 = vdwg.mxu0
        %1574 = vmatpush.bf16.msra.mxu0 %v1423
        %1575 = vmatpush.bf16.msra.mxu0 %v1422
        %1576 = vmatpush.bf16.msra.mxu0 %v1421
        %1577 = vmatpush.bf16.msra.mxu0 %v1420
        %1578 = vmatpush.bf16.msra.mxu0 %v1419
        %1579 = vmatpush.bf16.msra.mxu0 %v1418
        %1580 = vmatpush.bf16.msra.mxu0 %v1417
        %1581 = vmatpush.bf16.msra.mxu0 %v1416
        %1582 = vmatmul.bf16.gmra.mxu0 %v360
        %v1583 = vpop.f32.mrf.mxu0
        %v1584 = vadd.f32 %v1571, %v1583
        %v1585 = vpop.f32.mrf.mxu0
        %1586 = vdwg.mxu0
        %1587 = vmatpush.bf16.msra.mxu0 %v1431
        %1588 = vmatpush.bf16.msra.mxu0 %v1430
        %1589 = vmatpush.bf16.msra.mxu0 %v1429
        %1590 = vmatpush.bf16.msra.mxu0 %v1428
        %1591 = vmatpush.bf16.msra.mxu0 %v1427
        %1592 = vmatpush.bf16.msra.mxu0 %v1426
        %1593 = vmatpush.bf16.msra.mxu0 %v1425
        %1594 = vmatpush.bf16.msra.mxu0 %v1424
        %1595 = vmatmul.bf16.gmra.mxu0 %v361
        %v1596 = vpop.f32.mrf.mxu0
        %v1597 = vadd.f32 %v1584, %v1596
        %v1598 = vpop.f32.mrf.mxu0
        %1599 = vdwg.mxu0
        %v1600 = vadd.f32 %v982, %v1597
        %1601 = vst [vmem:[%s981] sm:$0x3] %v1600
        %s1602 = scalar_lea.vmem [#allocation2], 4
        %v1603 = vld [vmem:[%s1602] sm:$0x3]
        %s1604 = scalar_lea.vmem %s282, 1024 [#allocation6]
        %v1605 = vld [vmem:[%s1604] sm:$0xf]
        %v1606 = vld [vmem:[%s1604 + $0x4] sm:$0xf]
        %v1607 = vld [vmem:[%s1604 + $0x8] sm:$0xf]
        %v1608 = vld [vmem:[%s1604 + $0xc] sm:$0xf]
        %v1609 = vld [vmem:[%s1604 + $0x10] sm:$0xf]
        %v1610 = vld [vmem:[%s1604 + $0x14] sm:$0xf]
        %v1611 = vld [vmem:[%s1604 + $0x18] sm:$0xf]
        %v1612 = vld [vmem:[%s1604 + $0x1c] sm:$0xf]
        %v1613 = vld [vmem:[%s1604 + $0x20] sm:$0xf]
        %v1614 = vld [vmem:[%s1604 + $0x24] sm:$0xf]
        %v1615 = vld [vmem:[%s1604 + $0x28] sm:$0xf]
        %v1616 = vld [vmem:[%s1604 + $0x2c] sm:$0xf]
        %v1617 = vld [vmem:[%s1604 + $0x30] sm:$0xf]
        %v1618 = vld [vmem:[%s1604 + $0x34] sm:$0xf]
        %v1619 = vld [vmem:[%s1604 + $0x38] sm:$0xf]
        %v1620 = vld [vmem:[%s1604 + $0x3c] sm:$0xf]
        %v1621 = vld [vmem:[%s1604 + $0x40] sm:$0xf]
        %v1622 = vld [vmem:[%s1604 + $0x44] sm:$0xf]
        %v1623 = vld [vmem:[%s1604 + $0x48] sm:$0xf]
        %v1624 = vld [vmem:[%s1604 + $0x4c] sm:$0xf]
        %v1625 = vld [vmem:[%s1604 + $0x50] sm:$0xf]
        %v1626 = vld [vmem:[%s1604 + $0x54] sm:$0xf]
        %v1627 = vld [vmem:[%s1604 + $0x58] sm:$0xf]
        %v1628 = vld [vmem:[%s1604 + $0x5c] sm:$0xf]
        %v1629 = vld [vmem:[%s1604 + $0x60] sm:$0xf]
        %v1630 = vld [vmem:[%s1604 + $0x64] sm:$0xf]
        %v1631 = vld [vmem:[%s1604 + $0x68] sm:$0xf]
        %v1632 = vld [vmem:[%s1604 + $0x6c] sm:$0xf]
        %v1633 = vld [vmem:[%s1604 + $0x70] sm:$0xf]
        %v1634 = vld [vmem:[%s1604 + $0x74] sm:$0xf]
        %v1635 = vld [vmem:[%s1604 + $0x78] sm:$0xf]
        %v1636 = vld [vmem:[%s1604 + $0x7c] sm:$0xf]
        %v1637 = vld [vmem:[%s1604 + $0x80] sm:$0xf]
        %v1638 = vld [vmem:[%s1604 + $0x84] sm:$0xf]
        %v1639 = vld [vmem:[%s1604 + $0x88] sm:$0xf]
        %v1640 = vld [vmem:[%s1604 + $0x8c] sm:$0xf]
        %v1641 = vld [vmem:[%s1604 + $0x90] sm:$0xf]
        %v1642 = vld [vmem:[%s1604 + $0x94] sm:$0xf]
        %v1643 = vld [vmem:[%s1604 + $0x98] sm:$0xf]
        %v1644 = vld [vmem:[%s1604 + $0x9c] sm:$0xf]
        %v1645 = vld [vmem:[%s1604 + $0xa0] sm:$0xf]
        %v1646 = vld [vmem:[%s1604 + $0xa4] sm:$0xf]
        %v1647 = vld [vmem:[%s1604 + $0xa8] sm:$0xf]
        %v1648 = vld [vmem:[%s1604 + $0xac] sm:$0xf]
        %v1649 = vld [vmem:[%s1604 + $0xb0] sm:$0xf]
        %v1650 = vld [vmem:[%s1604 + $0xb4] sm:$0xf]
        %v1651 = vld [vmem:[%s1604 + $0xb8] sm:$0xf]
        %v1652 = vld [vmem:[%s1604 + $0xbc] sm:$0xf]
        %v1653 = vld [vmem:[%s1604 + $0xc0] sm:$0xf]
        %v1654 = vld [vmem:[%s1604 + $0xc4] sm:$0xf]
        %v1655 = vld [vmem:[%s1604 + $0xc8] sm:$0xf]
        %v1656 = vld [vmem:[%s1604 + $0xcc] sm:$0xf]
        %v1657 = vld [vmem:[%s1604 + $0xd0] sm:$0xf]
        %v1658 = vld [vmem:[%s1604 + $0xd4] sm:$0xf]
        %v1659 = vld [vmem:[%s1604 + $0xd8] sm:$0xf]
        %v1660 = vld [vmem:[%s1604 + $0xdc] sm:$0xf]
        %v1661 = vld [vmem:[%s1604 + $0xe0] sm:$0xf]
        %v1662 = vld [vmem:[%s1604 + $0xe4] sm:$0xf]
        %v1663 = vld [vmem:[%s1604 + $0xe8] sm:$0xf]
        %v1664 = vld [vmem:[%s1604 + $0xec] sm:$0xf]
        %v1665 = vld [vmem:[%s1604 + $0xf0] sm:$0xf]
        %v1666 = vld [vmem:[%s1604 + $0xf4] sm:$0xf]
        %v1667 = vld [vmem:[%s1604 + $0xf8] sm:$0xf]
        %v1668 = vld [vmem:[%s1604 + $0xfc] sm:$0xf]
        %v1669 = vld [vmem:[%s1604 + $0x100] sm:$0xf]
        %v1670 = vld [vmem:[%s1604 + $0x104] sm:$0xf]
        %v1671 = vld [vmem:[%s1604 + $0x108] sm:$0xf]
        %v1672 = vld [vmem:[%s1604 + $0x10c] sm:$0xf]
        %v1673 = vld [vmem:[%s1604 + $0x110] sm:$0xf]
        %v1674 = vld [vmem:[%s1604 + $0x114] sm:$0xf]
        %v1675 = vld [vmem:[%s1604 + $0x118] sm:$0xf]
        %v1676 = vld [vmem:[%s1604 + $0x11c] sm:$0xf]
        %v1677 = vld [vmem:[%s1604 + $0x120] sm:$0xf]
        %v1678 = vld [vmem:[%s1604 + $0x124] sm:$0xf]
        %v1679 = vld [vmem:[%s1604 + $0x128] sm:$0xf]
        %v1680 = vld [vmem:[%s1604 + $0x12c] sm:$0xf]
        %v1681 = vld [vmem:[%s1604 + $0x130] sm:$0xf]
        %v1682 = vld [vmem:[%s1604 + $0x134] sm:$0xf]
        %v1683 = vld [vmem:[%s1604 + $0x138] sm:$0xf]
        %v1684 = vld [vmem:[%s1604 + $0x13c] sm:$0xf]
        %v1685 = vld [vmem:[%s1604 + $0x140] sm:$0xf]
        %v1686 = vld [vmem:[%s1604 + $0x144] sm:$0xf]
        %v1687 = vld [vmem:[%s1604 + $0x148] sm:$0xf]
        %v1688 = vld [vmem:[%s1604 + $0x14c] sm:$0xf]
        %v1689 = vld [vmem:[%s1604 + $0x150] sm:$0xf]
        %v1690 = vld [vmem:[%s1604 + $0x154] sm:$0xf]
        %v1691 = vld [vmem:[%s1604 + $0x158] sm:$0xf]
        %v1692 = vld [vmem:[%s1604 + $0x15c] sm:$0xf]
        %v1693 = vld [vmem:[%s1604 + $0x160] sm:$0xf]
        %v1694 = vld [vmem:[%s1604 + $0x164] sm:$0xf]
        %v1695 = vld [vmem:[%s1604 + $0x168] sm:$0xf]
        %v1696 = vld [vmem:[%s1604 + $0x16c] sm:$0xf]
        %v1697 = vld [vmem:[%s1604 + $0x170] sm:$0xf]
        %v1698 = vld [vmem:[%s1604 + $0x174] sm:$0xf]
        %v1699 = vld [vmem:[%s1604 + $0x178] sm:$0xf]
        %v1700 = vld [vmem:[%s1604 + $0x17c] sm:$0xf]
        %v1701 = vld [vmem:[%s1604 + $0x180] sm:$0xf]
        %v1702 = vld [vmem:[%s1604 + $0x184] sm:$0xf]
        %v1703 = vld [vmem:[%s1604 + $0x188] sm:$0xf]
        %v1704 = vld [vmem:[%s1604 + $0x18c] sm:$0xf]
        %v1705 = vld [vmem:[%s1604 + $0x190] sm:$0xf]
        %v1706 = vld [vmem:[%s1604 + $0x194] sm:$0xf]
        %v1707 = vld [vmem:[%s1604 + $0x198] sm:$0xf]
        %v1708 = vld [vmem:[%s1604 + $0x19c] sm:$0xf]
        %v1709 = vld [vmem:[%s1604 + $0x1a0] sm:$0xf]
        %v1710 = vld [vmem:[%s1604 + $0x1a4] sm:$0xf]
        %v1711 = vld [vmem:[%s1604 + $0x1a8] sm:$0xf]
        %v1712 = vld [vmem:[%s1604 + $0x1ac] sm:$0xf]
        %v1713 = vld [vmem:[%s1604 + $0x1b0] sm:$0xf]
        %v1714 = vld [vmem:[%s1604 + $0x1b4] sm:$0xf]
        %v1715 = vld [vmem:[%s1604 + $0x1b8] sm:$0xf]
        %v1716 = vld [vmem:[%s1604 + $0x1bc] sm:$0xf]
        %v1717 = vld [vmem:[%s1604 + $0x1c0] sm:$0xf]
        %v1718 = vld [vmem:[%s1604 + $0x1c4] sm:$0xf]
        %v1719 = vld [vmem:[%s1604 + $0x1c8] sm:$0xf]
        %v1720 = vld [vmem:[%s1604 + $0x1cc] sm:$0xf]
        %v1721 = vld [vmem:[%s1604 + $0x1d0] sm:$0xf]
        %v1722 = vld [vmem:[%s1604 + $0x1d4] sm:$0xf]
        %v1723 = vld [vmem:[%s1604 + $0x1d8] sm:$0xf]
        %v1724 = vld [vmem:[%s1604 + $0x1dc] sm:$0xf]
        %v1725 = vld [vmem:[%s1604 + $0x1e0] sm:$0xf]
        %v1726 = vld [vmem:[%s1604 + $0x1e4] sm:$0xf]
        %v1727 = vld [vmem:[%s1604 + $0x1e8] sm:$0xf]
        %v1728 = vld [vmem:[%s1604 + $0x1ec] sm:$0xf]
        %v1729 = vld [vmem:[%s1604 + $0x1f0] sm:$0xf]
        %v1730 = vld [vmem:[%s1604 + $0x1f4] sm:$0xf]
        %v1731 = vld [vmem:[%s1604 + $0x1f8] sm:$0xf]
        %v1732 = vld [vmem:[%s1604 + $0x1fc] sm:$0xf]
        %v1861 = vunpack.c.l.b16 %v1605
        %v1862 = vunpack.c.l.b16 %v1606
        %v1863 = vunpack.c.l.b16 %v1607
        %v1864 = vunpack.c.l.b16 %v1608
        %v1865 = vunpack.c.l.b16 %v1609
        %v1866 = vunpack.c.l.b16 %v1610
        %v1867 = vunpack.c.l.b16 %v1611
        %v1868 = vunpack.c.l.b16 %v1612
        %v1869 = vunpack.c.l.b16 %v1613
        %v1870 = vunpack.c.l.b16 %v1614
        %v1871 = vunpack.c.l.b16 %v1615
        %v1872 = vunpack.c.l.b16 %v1616
        %v1873 = vunpack.c.l.b16 %v1617
        %v1874 = vunpack.c.l.b16 %v1618
        %v1875 = vunpack.c.l.b16 %v1619
        %v1876 = vunpack.c.l.b16 %v1620
        %v1877 = vunpack.c.l.b16 %v1621
        %v1878 = vunpack.c.l.b16 %v1622
        %v1879 = vunpack.c.l.b16 %v1623
        %v1880 = vunpack.c.l.b16 %v1624
        %v1881 = vunpack.c.l.b16 %v1625
        %v1882 = vunpack.c.l.b16 %v1626
        %v1883 = vunpack.c.l.b16 %v1627
        %v1884 = vunpack.c.l.b16 %v1628
        %v1885 = vunpack.c.l.b16 %v1629
        %v1886 = vunpack.c.l.b16 %v1630
        %v1887 = vunpack.c.l.b16 %v1631
        %v1888 = vunpack.c.l.b16 %v1632
        %v1889 = vunpack.c.l.b16 %v1633
        %v1890 = vunpack.c.l.b16 %v1634
        %v1891 = vunpack.c.l.b16 %v1635
        %v1892 = vunpack.c.l.b16 %v1636
        %v1893 = vunpack.c.l.b16 %v1637
        %v1894 = vunpack.c.l.b16 %v1638
        %v1895 = vunpack.c.l.b16 %v1639
        %v1896 = vunpack.c.l.b16 %v1640
        %v1897 = vunpack.c.l.b16 %v1641
        %v1898 = vunpack.c.l.b16 %v1642
        %v1899 = vunpack.c.l.b16 %v1643
        %v1900 = vunpack.c.l.b16 %v1644
        %v1901 = vunpack.c.l.b16 %v1645
        %v1902 = vunpack.c.l.b16 %v1646
        %v1903 = vunpack.c.l.b16 %v1647
        %v1904 = vunpack.c.l.b16 %v1648
        %v1905 = vunpack.c.l.b16 %v1649
        %v1906 = vunpack.c.l.b16 %v1650
        %v1907 = vunpack.c.l.b16 %v1651
        %v1908 = vunpack.c.l.b16 %v1652
        %v1909 = vunpack.c.l.b16 %v1653
        %v1910 = vunpack.c.l.b16 %v1654
        %v1911 = vunpack.c.l.b16 %v1655
        %v1912 = vunpack.c.l.b16 %v1656
        %v1913 = vunpack.c.l.b16 %v1657
        %v1914 = vunpack.c.l.b16 %v1658
        %v1915 = vunpack.c.l.b16 %v1659
        %v1916 = vunpack.c.l.b16 %v1660
        %v1917 = vunpack.c.l.b16 %v1661
        %v1918 = vunpack.c.l.b16 %v1662
        %v1919 = vunpack.c.l.b16 %v1663
        %v1920 = vunpack.c.l.b16 %v1664
        %v1921 = vunpack.c.l.b16 %v1665
        %v1922 = vunpack.c.l.b16 %v1666
        %v1923 = vunpack.c.l.b16 %v1667
        %v1924 = vunpack.c.l.b16 %v1668
        %v1925 = vunpack.c.l.b16 %v1669
        %v1926 = vunpack.c.l.b16 %v1670
        %v1927 = vunpack.c.l.b16 %v1671
        %v1928 = vunpack.c.l.b16 %v1672
        %v1929 = vunpack.c.l.b16 %v1673
        %v1930 = vunpack.c.l.b16 %v1674
        %v1931 = vunpack.c.l.b16 %v1675
        %v1932 = vunpack.c.l.b16 %v1676
        %v1933 = vunpack.c.l.b16 %v1677
        %v1934 = vunpack.c.l.b16 %v1678
        %v1935 = vunpack.c.l.b16 %v1679
        %v1936 = vunpack.c.l.b16 %v1680
        %v1937 = vunpack.c.l.b16 %v1681
        %v1938 = vunpack.c.l.b16 %v1682
        %v1939 = vunpack.c.l.b16 %v1683
        %v1940 = vunpack.c.l.b16 %v1684
        %v1941 = vunpack.c.l.b16 %v1685
        %v1942 = vunpack.c.l.b16 %v1686
        %v1943 = vunpack.c.l.b16 %v1687
        %v1944 = vunpack.c.l.b16 %v1688
        %v1945 = vunpack.c.l.b16 %v1689
        %v1946 = vunpack.c.l.b16 %v1690
        %v1947 = vunpack.c.l.b16 %v1691
        %v1948 = vunpack.c.l.b16 %v1692
        %v1949 = vunpack.c.l.b16 %v1693
        %v1950 = vunpack.c.l.b16 %v1694
        %v1951 = vunpack.c.l.b16 %v1695
        %v1952 = vunpack.c.l.b16 %v1696
        %v1953 = vunpack.c.l.b16 %v1697
        %v1954 = vunpack.c.l.b16 %v1698
        %v1955 = vunpack.c.l.b16 %v1699
        %v1956 = vunpack.c.l.b16 %v1700
        %v1957 = vunpack.c.l.b16 %v1701
        %v1958 = vunpack.c.l.b16 %v1702
        %v1959 = vunpack.c.l.b16 %v1703
        %v1960 = vunpack.c.l.b16 %v1704
        %v1961 = vunpack.c.l.b16 %v1705
        %v1962 = vunpack.c.l.b16 %v1706
        %v1963 = vunpack.c.l.b16 %v1707
        %v1964 = vunpack.c.l.b16 %v1708
        %v1965 = vunpack.c.l.b16 %v1709
        %v1966 = vunpack.c.l.b16 %v1710
        %v1967 = vunpack.c.l.b16 %v1711
        %v1968 = vunpack.c.l.b16 %v1712
        %v1969 = vunpack.c.l.b16 %v1713
        %v1970 = vunpack.c.l.b16 %v1714
        %v1971 = vunpack.c.l.b16 %v1715
        %v1972 = vunpack.c.l.b16 %v1716
        %v1973 = vunpack.c.l.b16 %v1717
        %v1974 = vunpack.c.l.b16 %v1718
        %v1975 = vunpack.c.l.b16 %v1719
        %v1976 = vunpack.c.l.b16 %v1720
        %v1977 = vunpack.c.l.b16 %v1721
        %v1978 = vunpack.c.l.b16 %v1722
        %v1979 = vunpack.c.l.b16 %v1723
        %v1980 = vunpack.c.l.b16 %v1724
        %v1981 = vunpack.c.l.b16 %v1725
        %v1982 = vunpack.c.l.b16 %v1726
        %v1983 = vunpack.c.l.b16 %v1727
        %v1984 = vunpack.c.l.b16 %v1728
        %v1985 = vunpack.c.l.b16 %v1729
        %v1986 = vunpack.c.l.b16 %v1730
        %v1987 = vunpack.c.l.b16 %v1731
        %v1988 = vunpack.c.l.b16 %v1732
        %v1989 = vpack.c.b16 %v1862, %v1861
        %v1990 = vpack.c.b16 %v1864, %v1863
        %v1991 = vpack.c.b16 %v1866, %v1865
        %v1992 = vpack.c.b16 %v1868, %v1867
        %v1993 = vpack.c.b16 %v1870, %v1869
        %v1994 = vpack.c.b16 %v1872, %v1871
        %v1995 = vpack.c.b16 %v1874, %v1873
        %v1996 = vpack.c.b16 %v1876, %v1875
        %v1997 = vpack.c.b16 %v1878, %v1877
        %v1998 = vpack.c.b16 %v1880, %v1879
        %v1999 = vpack.c.b16 %v1882, %v1881
        %v2000 = vpack.c.b16 %v1884, %v1883
        %v2001 = vpack.c.b16 %v1886, %v1885
        %v2002 = vpack.c.b16 %v1888, %v1887
        %v2003 = vpack.c.b16 %v1890, %v1889
        %v2004 = vpack.c.b16 %v1892, %v1891
        %v2005 = vpack.c.b16 %v1894, %v1893
        %v2006 = vpack.c.b16 %v1896, %v1895
        %v2007 = vpack.c.b16 %v1898, %v1897
        %v2008 = vpack.c.b16 %v1900, %v1899
        %v2009 = vpack.c.b16 %v1902, %v1901
        %v2010 = vpack.c.b16 %v1904, %v1903
        %v2011 = vpack.c.b16 %v1906, %v1905
        %v2012 = vpack.c.b16 %v1908, %v1907
        %v2013 = vpack.c.b16 %v1910, %v1909
        %v2014 = vpack.c.b16 %v1912, %v1911
        %v2015 = vpack.c.b16 %v1914, %v1913
        %v2016 = vpack.c.b16 %v1916, %v1915
        %v2017 = vpack.c.b16 %v1918, %v1917
        %v2018 = vpack.c.b16 %v1920, %v1919
        %v2019 = vpack.c.b16 %v1922, %v1921
        %v2020 = vpack.c.b16 %v1924, %v1923
        %v2021 = vpack.c.b16 %v1926, %v1925
        %v2022 = vpack.c.b16 %v1928, %v1927
        %v2023 = vpack.c.b16 %v1930, %v1929
        %v2024 = vpack.c.b16 %v1932, %v1931
        %v2025 = vpack.c.b16 %v1934, %v1933
        %v2026 = vpack.c.b16 %v1936, %v1935
        %v2027 = vpack.c.b16 %v1938, %v1937
        %v2028 = vpack.c.b16 %v1940, %v1939
        %v2029 = vpack.c.b16 %v1942, %v1941
        %v2030 = vpack.c.b16 %v1944, %v1943
        %v2031 = vpack.c.b16 %v1946, %v1945
        %v2032 = vpack.c.b16 %v1948, %v1947
        %v2033 = vpack.c.b16 %v1950, %v1949
        %v2034 = vpack.c.b16 %v1952, %v1951
        %v2035 = vpack.c.b16 %v1954, %v1953
        %v2036 = vpack.c.b16 %v1956, %v1955
        %v2037 = vpack.c.b16 %v1958, %v1957
        %v2038 = vpack.c.b16 %v1960, %v1959
        %v2039 = vpack.c.b16 %v1962, %v1961
        %v2040 = vpack.c.b16 %v1964, %v1963
        %v2041 = vpack.c.b16 %v1966, %v1965
        %v2042 = vpack.c.b16 %v1968, %v1967
        %v2043 = vpack.c.b16 %v1970, %v1969
        %v2044 = vpack.c.b16 %v1972, %v1971
        %v2045 = vpack.c.b16 %v1974, %v1973
        %v2046 = vpack.c.b16 %v1976, %v1975
        %v2047 = vpack.c.b16 %v1978, %v1977
        %v2048 = vpack.c.b16 %v1980, %v1979
        %v2049 = vpack.c.b16 %v1982, %v1981
        %v2050 = vpack.c.b16 %v1984, %v1983
        %v2051 = vpack.c.b16 %v1986, %v1985
        %v2052 = vpack.c.b16 %v1988, %v1987
        %2117 = vmatpush.bf16.msra.mxu0 %v1996
        %2118 = vmatpush.bf16.msra.mxu0 %v1995
        %2119 = vmatpush.bf16.msra.mxu0 %v1994
        %2120 = vmatpush.bf16.msra.mxu0 %v1993
        %2121 = vmatpush.bf16.msra.mxu0 %v1992
        %2122 = vmatpush.bf16.msra.mxu0 %v1991
        %2123 = vmatpush.bf16.msra.mxu0 %v1990
        %2124 = vmatpush.bf16.msra.mxu0 %v1989
        %2125 = vmatmul.bf16.gmra.mxu0 %v354
        %v2126 = vpop.f32.mrf.mxu0
        %v2127 = vadd.f32 0.0, %v2126
        %v2128 = vpop.f32.mrf.mxu0
        %2129 = vdwg.mxu0
        %2130 = vmatpush.bf16.msra.mxu0 %v2004
        %2131 = vmatpush.bf16.msra.mxu0 %v2003
        %2132 = vmatpush.bf16.msra.mxu0 %v2002
        %2133 = vmatpush.bf16.msra.mxu0 %v2001
        %2134 = vmatpush.bf16.msra.mxu0 %v2000
        %2135 = vmatpush.bf16.msra.mxu0 %v1999
        %2136 = vmatpush.bf16.msra.mxu0 %v1998
        %2137 = vmatpush.bf16.msra.mxu0 %v1997
        %2138 = vmatmul.bf16.gmra.mxu0 %v355
        %v2139 = vpop.f32.mrf.mxu0
        %v2140 = vadd.f32 %v2127, %v2139
        %v2141 = vpop.f32.mrf.mxu0
        %2142 = vdwg.mxu0
        %2143 = vmatpush.bf16.msra.mxu0 %v2012
        %2144 = vmatpush.bf16.msra.mxu0 %v2011
        %2145 = vmatpush.bf16.msra.mxu0 %v2010
        %2146 = vmatpush.bf16.msra.mxu0 %v2009
        %2147 = vmatpush.bf16.msra.mxu0 %v2008
        %2148 = vmatpush.bf16.msra.mxu0 %v2007
        %2149 = vmatpush.bf16.msra.mxu0 %v2006
        %2150 = vmatpush.bf16.msra.mxu0 %v2005
        %2151 = vmatmul.bf16.gmra.mxu0 %v356
        %v2152 = vpop.f32.mrf.mxu0
        %v2153 = vadd.f32 %v2140, %v2152
        %v2154 = vpop.f32.mrf.mxu0
        %2155 = vdwg.mxu0
        %2156 = vmatpush.bf16.msra.mxu0 %v2020
        %2157 = vmatpush.bf16.msra.mxu0 %v2019
        %2158 = vmatpush.bf16.msra.mxu0 %v2018
        %2159 = vmatpush.bf16.msra.mxu0 %v2017
        %2160 = vmatpush.bf16.msra.mxu0 %v2016
        %2161 = vmatpush.bf16.msra.mxu0 %v2015
        %2162 = vmatpush.bf16.msra.mxu0 %v2014
        %2163 = vmatpush.bf16.msra.mxu0 %v2013
        %2164 = vmatmul.bf16.gmra.mxu0 %v357
        %v2165 = vpop.f32.mrf.mxu0
        %v2166 = vadd.f32 %v2153, %v2165
        %v2167 = vpop.f32.mrf.mxu0
        %2168 = vdwg.mxu0
        %2169 = vmatpush.bf16.msra.mxu0 %v2028
        %2170 = vmatpush.bf16.msra.mxu0 %v2027
        %2171 = vmatpush.bf16.msra.mxu0 %v2026
        %2172 = vmatpush.bf16.msra.mxu0 %v2025
        %2173 = vmatpush.bf16.msra.mxu0 %v2024
        %2174 = vmatpush.bf16.msra.mxu0 %v2023
        %2175 = vmatpush.bf16.msra.mxu0 %v2022
        %2176 = vmatpush.bf16.msra.mxu0 %v2021
        %2177 = vmatmul.bf16.gmra.mxu0 %v358
        %v2178 = vpop.f32.mrf.mxu0
        %v2179 = vadd.f32 %v2166, %v2178
        %v2180 = vpop.f32.mrf.mxu0
        %2181 = vdwg.mxu0
        %2182 = vmatpush.bf16.msra.mxu0 %v2036
        %2183 = vmatpush.bf16.msra.mxu0 %v2035
        %2184 = vmatpush.bf16.msra.mxu0 %v2034
        %2185 = vmatpush.bf16.msra.mxu0 %v2033
        %2186 = vmatpush.bf16.msra.mxu0 %v2032
        %2187 = vmatpush.bf16.msra.mxu0 %v2031
        %2188 = vmatpush.bf16.msra.mxu0 %v2030
        %2189 = vmatpush.bf16.msra.mxu0 %v2029
        %2190 = vmatmul.bf16.gmra.mxu0 %v359
        %v2191 = vpop.f32.mrf.mxu0
        %v2192 = vadd.f32 %v2179, %v2191
        %v2193 = vpop.f32.mrf.mxu0
        %2194 = vdwg.mxu0
        %2195 = vmatpush.bf16.msra.mxu0 %v2044
        %2196 = vmatpush.bf16.msra.mxu0 %v2043
        %2197 = vmatpush.bf16.msra.mxu0 %v2042
        %2198 = vmatpush.bf16.msra.mxu0 %v2041
        %2199 = vmatpush.bf16.msra.mxu0 %v2040
        %2200 = vmatpush.bf16.msra.mxu0 %v2039
        %2201 = vmatpush.bf16.msra.mxu0 %v2038
        %2202 = vmatpush.bf16.msra.mxu0 %v2037
        %2203 = vmatmul.bf16.gmra.mxu0 %v360
        %v2204 = vpop.f32.mrf.mxu0
        %v2205 = vadd.f32 %v2192, %v2204
        %v2206 = vpop.f32.mrf.mxu0
        %2207 = vdwg.mxu0
        %2208 = vmatpush.bf16.msra.mxu0 %v2052
        %2209 = vmatpush.bf16.msra.mxu0 %v2051
        %2210 = vmatpush.bf16.msra.mxu0 %v2050
        %2211 = vmatpush.bf16.msra.mxu0 %v2049
        %2212 = vmatpush.bf16.msra.mxu0 %v2048
        %2213 = vmatpush.bf16.msra.mxu0 %v2047
        %2214 = vmatpush.bf16.msra.mxu0 %v2046
        %2215 = vmatpush.bf16.msra.mxu0 %v2045
        %2216 = vmatmul.bf16.gmra.mxu0 %v361
        %v2217 = vpop.f32.mrf.mxu0
        %v2218 = vadd.f32 %v2205, %v2217
        %v2219 = vpop.f32.mrf.mxu0
        %2220 = vdwg.mxu0
        %v2221 = vadd.f32 %v1603, %v2218
        %2222 = vst [vmem:[%s1602] sm:$0x3] %v2221
        %s2223 = scalar_lea.vmem [#allocation2], 6
        %v2224 = vld [vmem:[%s2223] sm:$0x3]
        %s2225 = scalar_lea.vmem %s282, 1536 [#allocation6]
        %v2226 = vld [vmem:[%s2225] sm:$0xf]
        %v2227 = vld [vmem:[%s2225 + $0x4] sm:$0xf]
        %v2228 = vld [vmem:[%s2225 + $0x8] sm:$0xf]
        %v2229 = vld [vmem:[%s2225 + $0xc] sm:$0xf]
        %v2230 = vld [vmem:[%s2225 + $0x10] sm:$0xf]
        %v2231 = vld [vmem:[%s2225 + $0x14] sm:$0xf]
        %v2232 = vld [vmem:[%s2225 + $0x18] sm:$0xf]
        %v2233 = vld [vmem:[%s2225 + $0x1c] sm:$0xf]
        %v2234 = vld [vmem:[%s2225 + $0x20] sm:$0xf]
        %v2235 = vld [vmem:[%s2225 + $0x24] sm:$0xf]
        %v2236 = vld [vmem:[%s2225 + $0x28] sm:$0xf]
        %v2237 = vld [vmem:[%s2225 + $0x2c] sm:$0xf]
        %v2238 = vld [vmem:[%s2225 + $0x30] sm:$0xf]
        %v2239 = vld [vmem:[%s2225 + $0x34] sm:$0xf]
        %v2240 = vld [vmem:[%s2225 + $0x38] sm:$0xf]
        %v2241 = vld [vmem:[%s2225 + $0x3c] sm:$0xf]
        %v2242 = vld [vmem:[%s2225 + $0x40] sm:$0xf]
        %v2243 = vld [vmem:[%s2225 + $0x44] sm:$0xf]
        %v2244 = vld [vmem:[%s2225 + $0x48] sm:$0xf]
        %v2245 = vld [vmem:[%s2225 + $0x4c] sm:$0xf]
        %v2246 = vld [vmem:[%s2225 + $0x50] sm:$0xf]
        %v2247 = vld [vmem:[%s2225 + $0x54] sm:$0xf]
        %v2248 = vld [vmem:[%s2225 + $0x58] sm:$0xf]
        %v2249 = vld [vmem:[%s2225 + $0x5c] sm:$0xf]
        %v2250 = vld [vmem:[%s2225 + $0x60] sm:$0xf]
        %v2251 = vld [vmem:[%s2225 + $0x64] sm:$0xf]
        %v2252 = vld [vmem:[%s2225 + $0x68] sm:$0xf]
        %v2253 = vld [vmem:[%s2225 + $0x6c] sm:$0xf]
        %v2254 = vld [vmem:[%s2225 + $0x70] sm:$0xf]
        %v2255 = vld [vmem:[%s2225 + $0x74] sm:$0xf]
        %v2256 = vld [vmem:[%s2225 + $0x78] sm:$0xf]
        %v2257 = vld [vmem:[%s2225 + $0x7c] sm:$0xf]
        %v2258 = vld [vmem:[%s2225 + $0x80] sm:$0xf]
        %v2259 = vld [vmem:[%s2225 + $0x84] sm:$0xf]
        %v2260 = vld [vmem:[%s2225 + $0x88] sm:$0xf]
        %v2261 = vld [vmem:[%s2225 + $0x8c] sm:$0xf]
        %v2262 = vld [vmem:[%s2225 + $0x90] sm:$0xf]
        %v2263 = vld [vmem:[%s2225 + $0x94] sm:$0xf]
        %v2264 = vld [vmem:[%s2225 + $0x98] sm:$0xf]
        %v2265 = vld [vmem:[%s2225 + $0x9c] sm:$0xf]
        %v2266 = vld [vmem:[%s2225 + $0xa0] sm:$0xf]
        %v2267 = vld [vmem:[%s2225 + $0xa4] sm:$0xf]
        %v2268 = vld [vmem:[%s2225 + $0xa8] sm:$0xf]
        %v2269 = vld [vmem:[%s2225 + $0xac] sm:$0xf]
        %v2270 = vld [vmem:[%s2225 + $0xb0] sm:$0xf]
        %v2271 = vld [vmem:[%s2225 + $0xb4] sm:$0xf]
        %v2272 = vld [vmem:[%s2225 + $0xb8] sm:$0xf]
        %v2273 = vld [vmem:[%s2225 + $0xbc] sm:$0xf]
        %v2274 = vld [vmem:[%s2225 + $0xc0] sm:$0xf]
        %v2275 = vld [vmem:[%s2225 + $0xc4] sm:$0xf]
        %v2276 = vld [vmem:[%s2225 + $0xc8] sm:$0xf]
        %v2277 = vld [vmem:[%s2225 + $0xcc] sm:$0xf]
        %v2278 = vld [vmem:[%s2225 + $0xd0] sm:$0xf]
        %v2279 = vld [vmem:[%s2225 + $0xd4] sm:$0xf]
        %v2280 = vld [vmem:[%s2225 + $0xd8] sm:$0xf]
        %v2281 = vld [vmem:[%s2225 + $0xdc] sm:$0xf]
        %v2282 = vld [vmem:[%s2225 + $0xe0] sm:$0xf]
        %v2283 = vld [vmem:[%s2225 + $0xe4] sm:$0xf]
        %v2284 = vld [vmem:[%s2225 + $0xe8] sm:$0xf]
        %v2285 = vld [vmem:[%s2225 + $0xec] sm:$0xf]
        %v2286 = vld [vmem:[%s2225 + $0xf0] sm:$0xf]
        %v2287 = vld [vmem:[%s2225 + $0xf4] sm:$0xf]
        %v2288 = vld [vmem:[%s2225 + $0xf8] sm:$0xf]
        %v2289 = vld [vmem:[%s2225 + $0xfc] sm:$0xf]
        %v2290 = vld [vmem:[%s2225 + $0x100] sm:$0xf]
        %v2291 = vld [vmem:[%s2225 + $0x104] sm:$0xf]
        %v2292 = vld [vmem:[%s2225 + $0x108] sm:$0xf]
        %v2293 = vld [vmem:[%s2225 + $0x10c] sm:$0xf]
        %v2294 = vld [vmem:[%s2225 + $0x110] sm:$0xf]
        %v2295 = vld [vmem:[%s2225 + $0x114] sm:$0xf]
        %v2296 = vld [vmem:[%s2225 + $0x118] sm:$0xf]
        %v2297 = vld [vmem:[%s2225 + $0x11c] sm:$0xf]
        %v2298 = vld [vmem:[%s2225 + $0x120] sm:$0xf]
        %v2299 = vld [vmem:[%s2225 + $0x124] sm:$0xf]
        %v2300 = vld [vmem:[%s2225 + $0x128] sm:$0xf]
        %v2301 = vld [vmem:[%s2225 + $0x12c] sm:$0xf]
        %v2302 = vld [vmem:[%s2225 + $0x130] sm:$0xf]
        %v2303 = vld [vmem:[%s2225 + $0x134] sm:$0xf]
        %v2304 = vld [vmem:[%s2225 + $0x138] sm:$0xf]
        %v2305 = vld [vmem:[%s2225 + $0x13c] sm:$0xf]
        %v2306 = vld [vmem:[%s2225 + $0x140] sm:$0xf]
        %v2307 = vld [vmem:[%s2225 + $0x144] sm:$0xf]
        %v2308 = vld [vmem:[%s2225 + $0x148] sm:$0xf]
        %v2309 = vld [vmem:[%s2225 + $0x14c] sm:$0xf]
        %v2310 = vld [vmem:[%s2225 + $0x150] sm:$0xf]
        %v2311 = vld [vmem:[%s2225 + $0x154] sm:$0xf]
        %v2312 = vld [vmem:[%s2225 + $0x158] sm:$0xf]
        %v2313 = vld [vmem:[%s2225 + $0x15c] sm:$0xf]
        %v2314 = vld [vmem:[%s2225 + $0x160] sm:$0xf]
        %v2315 = vld [vmem:[%s2225 + $0x164] sm:$0xf]
        %v2316 = vld [vmem:[%s2225 + $0x168] sm:$0xf]
        %v2317 = vld [vmem:[%s2225 + $0x16c] sm:$0xf]
        %v2318 = vld [vmem:[%s2225 + $0x170] sm:$0xf]
        %v2319 = vld [vmem:[%s2225 + $0x174] sm:$0xf]
        %v2320 = vld [vmem:[%s2225 + $0x178] sm:$0xf]
        %v2321 = vld [vmem:[%s2225 + $0x17c] sm:$0xf]
        %v2322 = vld [vmem:[%s2225 + $0x180] sm:$0xf]
        %v2323 = vld [vmem:[%s2225 + $0x184] sm:$0xf]
        %v2324 = vld [vmem:[%s2225 + $0x188] sm:$0xf]
        %v2325 = vld [vmem:[%s2225 + $0x18c] sm:$0xf]
        %v2326 = vld [vmem:[%s2225 + $0x190] sm:$0xf]
        %v2327 = vld [vmem:[%s2225 + $0x194] sm:$0xf]
        %v2328 = vld [vmem:[%s2225 + $0x198] sm:$0xf]
        %v2329 = vld [vmem:[%s2225 + $0x19c] sm:$0xf]
        %v2330 = vld [vmem:[%s2225 + $0x1a0] sm:$0xf]
        %v2331 = vld [vmem:[%s2225 + $0x1a4] sm:$0xf]
        %v2332 = vld [vmem:[%s2225 + $0x1a8] sm:$0xf]
        %v2333 = vld [vmem:[%s2225 + $0x1ac] sm:$0xf]
        %v2334 = vld [vmem:[%s2225 + $0x1b0] sm:$0xf]
        %v2335 = vld [vmem:[%s2225 + $0x1b4] sm:$0xf]
        %v2336 = vld [vmem:[%s2225 + $0x1b8] sm:$0xf]
        %v2337 = vld [vmem:[%s2225 + $0x1bc] sm:$0xf]
        %v2338 = vld [vmem:[%s2225 + $0x1c0] sm:$0xf]
        %v2339 = vld [vmem:[%s2225 + $0x1c4] sm:$0xf]
        %v2340 = vld [vmem:[%s2225 + $0x1c8] sm:$0xf]
        %v2341 = vld [vmem:[%s2225 + $0x1cc] sm:$0xf]
        %v2342 = vld [vmem:[%s2225 + $0x1d0] sm:$0xf]
        %v2343 = vld [vmem:[%s2225 + $0x1d4] sm:$0xf]
        %v2344 = vld [vmem:[%s2225 + $0x1d8] sm:$0xf]
        %v2345 = vld [vmem:[%s2225 + $0x1dc] sm:$0xf]
        %v2346 = vld [vmem:[%s2225 + $0x1e0] sm:$0xf]
        %v2347 = vld [vmem:[%s2225 + $0x1e4] sm:$0xf]
        %v2348 = vld [vmem:[%s2225 + $0x1e8] sm:$0xf]
        %v2349 = vld [vmem:[%s2225 + $0x1ec] sm:$0xf]
        %v2350 = vld [vmem:[%s2225 + $0x1f0] sm:$0xf]
        %v2351 = vld [vmem:[%s2225 + $0x1f4] sm:$0xf]
        %v2352 = vld [vmem:[%s2225 + $0x1f8] sm:$0xf]
        %v2353 = vld [vmem:[%s2225 + $0x1fc] sm:$0xf]
        %v2482 = vunpack.c.l.b16 %v2226
        %v2483 = vunpack.c.l.b16 %v2227
        %v2484 = vunpack.c.l.b16 %v2228
        %v2485 = vunpack.c.l.b16 %v2229
        %v2486 = vunpack.c.l.b16 %v2230
        %v2487 = vunpack.c.l.b16 %v2231
        %v2488 = vunpack.c.l.b16 %v2232
        %v2489 = vunpack.c.l.b16 %v2233
        %v2490 = vunpack.c.l.b16 %v2234
        %v2491 = vunpack.c.l.b16 %v2235
        %v2492 = vunpack.c.l.b16 %v2236
        %v2493 = vunpack.c.l.b16 %v2237
        %v2494 = vunpack.c.l.b16 %v2238
        %v2495 = vunpack.c.l.b16 %v2239
        %v2496 = vunpack.c.l.b16 %v2240
        %v2497 = vunpack.c.l.b16 %v2241
        %v2498 = vunpack.c.l.b16 %v2242
        %v2499 = vunpack.c.l.b16 %v2243
        %v2500 = vunpack.c.l.b16 %v2244
        %v2501 = vunpack.c.l.b16 %v2245
        %v2502 = vunpack.c.l.b16 %v2246
        %v2503 = vunpack.c.l.b16 %v2247
        %v2504 = vunpack.c.l.b16 %v2248
        %v2505 = vunpack.c.l.b16 %v2249
        %v2506 = vunpack.c.l.b16 %v2250
        %v2507 = vunpack.c.l.b16 %v2251
        %v2508 = vunpack.c.l.b16 %v2252
        %v2509 = vunpack.c.l.b16 %v2253
        %v2510 = vunpack.c.l.b16 %v2254
        %v2511 = vunpack.c.l.b16 %v2255
        %v2512 = vunpack.c.l.b16 %v2256
        %v2513 = vunpack.c.l.b16 %v2257
        %v2514 = vunpack.c.l.b16 %v2258
        %v2515 = vunpack.c.l.b16 %v2259
        %v2516 = vunpack.c.l.b16 %v2260
        %v2517 = vunpack.c.l.b16 %v2261
        %v2518 = vunpack.c.l.b16 %v2262
        %v2519 = vunpack.c.l.b16 %v2263
        %v2520 = vunpack.c.l.b16 %v2264
        %v2521 = vunpack.c.l.b16 %v2265
        %v2522 = vunpack.c.l.b16 %v2266
        %v2523 = vunpack.c.l.b16 %v2267
        %v2524 = vunpack.c.l.b16 %v2268
        %v2525 = vunpack.c.l.b16 %v2269
        %v2526 = vunpack.c.l.b16 %v2270
        %v2527 = vunpack.c.l.b16 %v2271
        %v2528 = vunpack.c.l.b16 %v2272
        %v2529 = vunpack.c.l.b16 %v2273
        %v2530 = vunpack.c.l.b16 %v2274
        %v2531 = vunpack.c.l.b16 %v2275
        %v2532 = vunpack.c.l.b16 %v2276
        %v2533 = vunpack.c.l.b16 %v2277
        %v2534 = vunpack.c.l.b16 %v2278
        %v2535 = vunpack.c.l.b16 %v2279
        %v2536 = vunpack.c.l.b16 %v2280
        %v2537 = vunpack.c.l.b16 %v2281
        %v2538 = vunpack.c.l.b16 %v2282
        %v2539 = vunpack.c.l.b16 %v2283
        %v2540 = vunpack.c.l.b16 %v2284
        %v2541 = vunpack.c.l.b16 %v2285
        %v2542 = vunpack.c.l.b16 %v2286
        %v2543 = vunpack.c.l.b16 %v2287
        %v2544 = vunpack.c.l.b16 %v2288
        %v2545 = vunpack.c.l.b16 %v2289
        %v2546 = vunpack.c.l.b16 %v2290
        %v2547 = vunpack.c.l.b16 %v2291
        %v2548 = vunpack.c.l.b16 %v2292
        %v2549 = vunpack.c.l.b16 %v2293
        %v2550 = vunpack.c.l.b16 %v2294
        %v2551 = vunpack.c.l.b16 %v2295
        %v2552 = vunpack.c.l.b16 %v2296
        %v2553 = vunpack.c.l.b16 %v2297
        %v2554 = vunpack.c.l.b16 %v2298
        %v2555 = vunpack.c.l.b16 %v2299
        %v2556 = vunpack.c.l.b16 %v2300
        %v2557 = vunpack.c.l.b16 %v2301
        %v2558 = vunpack.c.l.b16 %v2302
        %v2559 = vunpack.c.l.b16 %v2303
        %v2560 = vunpack.c.l.b16 %v2304
        %v2561 = vunpack.c.l.b16 %v2305
        %v2562 = vunpack.c.l.b16 %v2306
        %v2563 = vunpack.c.l.b16 %v2307
        %v2564 = vunpack.c.l.b16 %v2308
        %v2565 = vunpack.c.l.b16 %v2309
        %v2566 = vunpack.c.l.b16 %v2310
        %v2567 = vunpack.c.l.b16 %v2311
        %v2568 = vunpack.c.l.b16 %v2312
        %v2569 = vunpack.c.l.b16 %v2313
        %v2570 = vunpack.c.l.b16 %v2314
        %v2571 = vunpack.c.l.b16 %v2315
        %v2572 = vunpack.c.l.b16 %v2316
        %v2573 = vunpack.c.l.b16 %v2317
        %v2574 = vunpack.c.l.b16 %v2318
        %v2575 = vunpack.c.l.b16 %v2319
        %v2576 = vunpack.c.l.b16 %v2320
        %v2577 = vunpack.c.l.b16 %v2321
        %v2578 = vunpack.c.l.b16 %v2322
        %v2579 = vunpack.c.l.b16 %v2323
        %v2580 = vunpack.c.l.b16 %v2324
        %v2581 = vunpack.c.l.b16 %v2325
        %v2582 = vunpack.c.l.b16 %v2326
        %v2583 = vunpack.c.l.b16 %v2327
        %v2584 = vunpack.c.l.b16 %v2328
        %v2585 = vunpack.c.l.b16 %v2329
        %v2586 = vunpack.c.l.b16 %v2330
        %v2587 = vunpack.c.l.b16 %v2331
        %v2588 = vunpack.c.l.b16 %v2332
        %v2589 = vunpack.c.l.b16 %v2333
        %v2590 = vunpack.c.l.b16 %v2334
        %v2591 = vunpack.c.l.b16 %v2335
        %v2592 = vunpack.c.l.b16 %v2336
        %v2593 = vunpack.c.l.b16 %v2337
        %v2594 = vunpack.c.l.b16 %v2338
        %v2595 = vunpack.c.l.b16 %v2339
        %v2596 = vunpack.c.l.b16 %v2340
        %v2597 = vunpack.c.l.b16 %v2341
        %v2598 = vunpack.c.l.b16 %v2342
        %v2599 = vunpack.c.l.b16 %v2343
        %v2600 = vunpack.c.l.b16 %v2344
        %v2601 = vunpack.c.l.b16 %v2345
        %v2602 = vunpack.c.l.b16 %v2346
        %v2603 = vunpack.c.l.b16 %v2347
        %v2604 = vunpack.c.l.b16 %v2348
        %v2605 = vunpack.c.l.b16 %v2349
        %v2606 = vunpack.c.l.b16 %v2350
        %v2607 = vunpack.c.l.b16 %v2351
        %v2608 = vunpack.c.l.b16 %v2352
        %v2609 = vunpack.c.l.b16 %v2353
        %v2610 = vpack.c.b16 %v2483, %v2482
        %v2611 = vpack.c.b16 %v2485, %v2484
        %v2612 = vpack.c.b16 %v2487, %v2486
        %v2613 = vpack.c.b16 %v2489, %v2488
        %v2614 = vpack.c.b16 %v2491, %v2490
        %v2615 = vpack.c.b16 %v2493, %v2492
        %v2616 = vpack.c.b16 %v2495, %v2494
        %v2617 = vpack.c.b16 %v2497, %v2496
        %v2618 = vpack.c.b16 %v2499, %v2498
        %v2619 = vpack.c.b16 %v2501, %v2500
        %v2620 = vpack.c.b16 %v2503, %v2502
        %v2621 = vpack.c.b16 %v2505, %v2504
        %v2622 = vpack.c.b16 %v2507, %v2506
        %v2623 = vpack.c.b16 %v2509, %v2508
        %v2624 = vpack.c.b16 %v2511, %v2510
        %v2625 = vpack.c.b16 %v2513, %v2512
        %v2626 = vpack.c.b16 %v2515, %v2514
        %v2627 = vpack.c.b16 %v2517, %v2516
        %v2628 = vpack.c.b16 %v2519, %v2518
        %v2629 = vpack.c.b16 %v2521, %v2520
        %v2630 = vpack.c.b16 %v2523, %v2522
        %v2631 = vpack.c.b16 %v2525, %v2524
        %v2632 = vpack.c.b16 %v2527, %v2526
        %v2633 = vpack.c.b16 %v2529, %v2528
        %v2634 = vpack.c.b16 %v2531, %v2530
        %v2635 = vpack.c.b16 %v2533, %v2532
        %v2636 = vpack.c.b16 %v2535, %v2534
        %v2637 = vpack.c.b16 %v2537, %v2536
        %v2638 = vpack.c.b16 %v2539, %v2538
        %v2639 = vpack.c.b16 %v2541, %v2540
        %v2640 = vpack.c.b16 %v2543, %v2542
        %v2641 = vpack.c.b16 %v2545, %v2544
        %v2642 = vpack.c.b16 %v2547, %v2546
        %v2643 = vpack.c.b16 %v2549, %v2548
        %v2644 = vpack.c.b16 %v2551, %v2550
        %v2645 = vpack.c.b16 %v2553, %v2552
        %v2646 = vpack.c.b16 %v2555, %v2554
        %v2647 = vpack.c.b16 %v2557, %v2556
        %v2648 = vpack.c.b16 %v2559, %v2558
        %v2649 = vpack.c.b16 %v2561, %v2560
        %v2650 = vpack.c.b16 %v2563, %v2562
        %v2651 = vpack.c.b16 %v2565, %v2564
        %v2652 = vpack.c.b16 %v2567, %v2566
        %v2653 = vpack.c.b16 %v2569, %v2568
        %v2654 = vpack.c.b16 %v2571, %v2570
        %v2655 = vpack.c.b16 %v2573, %v2572
        %v2656 = vpack.c.b16 %v2575, %v2574
        %v2657 = vpack.c.b16 %v2577, %v2576
        %v2658 = vpack.c.b16 %v2579, %v2578
        %v2659 = vpack.c.b16 %v2581, %v2580
        %v2660 = vpack.c.b16 %v2583, %v2582
        %v2661 = vpack.c.b16 %v2585, %v2584
        %v2662 = vpack.c.b16 %v2587, %v2586
        %v2663 = vpack.c.b16 %v2589, %v2588
        %v2664 = vpack.c.b16 %v2591, %v2590
        %v2665 = vpack.c.b16 %v2593, %v2592
        %v2666 = vpack.c.b16 %v2595, %v2594
        %v2667 = vpack.c.b16 %v2597, %v2596
        %v2668 = vpack.c.b16 %v2599, %v2598
        %v2669 = vpack.c.b16 %v2601, %v2600
        %v2670 = vpack.c.b16 %v2603, %v2602
        %v2671 = vpack.c.b16 %v2605, %v2604
        %v2672 = vpack.c.b16 %v2607, %v2606
        %v2673 = vpack.c.b16 %v2609, %v2608
        %2738 = vmatpush.bf16.msra.mxu0 %v2617
        %2739 = vmatpush.bf16.msra.mxu0 %v2616
        %2740 = vmatpush.bf16.msra.mxu0 %v2615
        %2741 = vmatpush.bf16.msra.mxu0 %v2614
        %2742 = vmatpush.bf16.msra.mxu0 %v2613
        %2743 = vmatpush.bf16.msra.mxu0 %v2612
        %2744 = vmatpush.bf16.msra.mxu0 %v2611
        %2745 = vmatpush.bf16.msra.mxu0 %v2610
        %2746 = vmatmul.bf16.gmra.mxu0 %v354
        %v2747 = vpop.f32.mrf.mxu0
        %v2748 = vadd.f32 0.0, %v2747
        %v2749 = vpop.f32.mrf.mxu0
        %2750 = vdwg.mxu0
        %2751 = vmatpush.bf16.msra.mxu0 %v2625
        %2752 = vmatpush.bf16.msra.mxu0 %v2624
        %2753 = vmatpush.bf16.msra.mxu0 %v2623
        %2754 = vmatpush.bf16.msra.mxu0 %v2622
        %2755 = vmatpush.bf16.msra.mxu0 %v2621
        %2756 = vmatpush.bf16.msra.mxu0 %v2620
        %2757 = vmatpush.bf16.msra.mxu0 %v2619
        %2758 = vmatpush.bf16.msra.mxu0 %v2618
        %2759 = vmatmul.bf16.gmra.mxu0 %v355
        %v2760 = vpop.f32.mrf.mxu0
        %v2761 = vadd.f32 %v2748, %v2760
        %v2762 = vpop.f32.mrf.mxu0
        %2763 = vdwg.mxu0
        %2764 = vmatpush.bf16.msra.mxu0 %v2633
        %2765 = vmatpush.bf16.msra.mxu0 %v2632
        %2766 = vmatpush.bf16.msra.mxu0 %v2631
        %2767 = vmatpush.bf16.msra.mxu0 %v2630
        %2768 = vmatpush.bf16.msra.mxu0 %v2629
        %2769 = vmatpush.bf16.msra.mxu0 %v2628
        %2770 = vmatpush.bf16.msra.mxu0 %v2627
        %2771 = vmatpush.bf16.msra.mxu0 %v2626
        %2772 = vmatmul.bf16.gmra.mxu0 %v356
        %v2773 = vpop.f32.mrf.mxu0
        %v2774 = vadd.f32 %v2761, %v2773
        %v2775 = vpop.f32.mrf.mxu0
        %2776 = vdwg.mxu0
        %2777 = vmatpush.bf16.msra.mxu0 %v2641
        %2778 = vmatpush.bf16.msra.mxu0 %v2640
        %2779 = vmatpush.bf16.msra.mxu0 %v2639
        %2780 = vmatpush.bf16.msra.mxu0 %v2638
        %2781 = vmatpush.bf16.msra.mxu0 %v2637
        %2782 = vmatpush.bf16.msra.mxu0 %v2636
        %2783 = vmatpush.bf16.msra.mxu0 %v2635
        %2784 = vmatpush.bf16.msra.mxu0 %v2634
        %2785 = vmatmul.bf16.gmra.mxu0 %v357
        %v2786 = vpop.f32.mrf.mxu0
        %v2787 = vadd.f32 %v2774, %v2786
        %v2788 = vpop.f32.mrf.mxu0
        %2789 = vdwg.mxu0
        %2790 = vmatpush.bf16.msra.mxu0 %v2649
        %2791 = vmatpush.bf16.msra.mxu0 %v2648
        %2792 = vmatpush.bf16.msra.mxu0 %v2647
        %2793 = vmatpush.bf16.msra.mxu0 %v2646
        %2794 = vmatpush.bf16.msra.mxu0 %v2645
        %2795 = vmatpush.bf16.msra.mxu0 %v2644
        %2796 = vmatpush.bf16.msra.mxu0 %v2643
        %2797 = vmatpush.bf16.msra.mxu0 %v2642
        %2798 = vmatmul.bf16.gmra.mxu0 %v358
        %v2799 = vpop.f32.mrf.mxu0
        %v2800 = vadd.f32 %v2787, %v2799
        %v2801 = vpop.f32.mrf.mxu0
        %2802 = vdwg.mxu0
        %2803 = vmatpush.bf16.msra.mxu0 %v2657
        %2804 = vmatpush.bf16.msra.mxu0 %v2656
        %2805 = vmatpush.bf16.msra.mxu0 %v2655
        %2806 = vmatpush.bf16.msra.mxu0 %v2654
        %2807 = vmatpush.bf16.msra.mxu0 %v2653
        %2808 = vmatpush.bf16.msra.mxu0 %v2652
        %2809 = vmatpush.bf16.msra.mxu0 %v2651
        %2810 = vmatpush.bf16.msra.mxu0 %v2650
        %2811 = vmatmul.bf16.gmra.mxu0 %v359
        %v2812 = vpop.f32.mrf.mxu0
        %v2813 = vadd.f32 %v2800, %v2812
        %v2814 = vpop.f32.mrf.mxu0
        %2815 = vdwg.mxu0
        %2816 = vmatpush.bf16.msra.mxu0 %v2665
        %2817 = vmatpush.bf16.msra.mxu0 %v2664
        %2818 = vmatpush.bf16.msra.mxu0 %v2663
        %2819 = vmatpush.bf16.msra.mxu0 %v2662
        %2820 = vmatpush.bf16.msra.mxu0 %v2661
        %2821 = vmatpush.bf16.msra.mxu0 %v2660
        %2822 = vmatpush.bf16.msra.mxu0 %v2659
        %2823 = vmatpush.bf16.msra.mxu0 %v2658
        %2824 = vmatmul.bf16.gmra.mxu0 %v360
        %v2825 = vpop.f32.mrf.mxu0
        %v2826 = vadd.f32 %v2813, %v2825
        %v2827 = vpop.f32.mrf.mxu0
        %2828 = vdwg.mxu0
        %2829 = vmatpush.bf16.msra.mxu0 %v2673
        %2830 = vmatpush.bf16.msra.mxu0 %v2672
        %2831 = vmatpush.bf16.msra.mxu0 %v2671
        %2832 = vmatpush.bf16.msra.mxu0 %v2670
        %2833 = vmatpush.bf16.msra.mxu0 %v2669
        %2834 = vmatpush.bf16.msra.mxu0 %v2668
        %2835 = vmatpush.bf16.msra.mxu0 %v2667
        %2836 = vmatpush.bf16.msra.mxu0 %v2666
        %2837 = vmatmul.bf16.gmra.mxu0 %v361
        %v2838 = vpop.f32.mrf.mxu0
        %v2839 = vadd.f32 %v2826, %v2838
        %v2840 = vpop.f32.mrf.mxu0
        %2841 = vdwg.mxu0
        %v2842 = vadd.f32 %v2224, %v2839
        %2843 = vst [vmem:[%s2223] sm:$0x3] %v2842
        // Predicated region
        $region61: #{tpu_custom_call.1} parent=43 // pred_check
          %p2844 = pneg %p318
        $region62: #{tpu_custom_call.1} parent=43 // pred_check_branch
          %2846 = sbr.rel (%p2844) target = $region64
        $region63: #{tpu_custom_call.1} parent=43 // pred_region
          %v2847 = vld [vmem:[#allocation2] sm:$0x3]
          %v2848 = vld [vmem:[#allocation2 + $0x2] sm:$0x3]
          %v2849 = vld [vmem:[#allocation2 + $0x4] sm:$0x3]
          %v2850 = vld [vmem:[#allocation2 + $0x6] sm:$0x3]
          %v2851 = vld [vmem:[%s2] sm:$0xff]
          %v2852 = vld [vmem:[%s2 + $0x8] sm:$0xff]
          %v2853 = vld [vmem:[%s2 + $0x10] sm:$0xff]
          %v2854 = vld [vmem:[%s2 + $0x18] sm:$0xff]
          %v2855 = vld [vmem:[%s3] sm:$0xff]
          %v2856 = vld [vmem:[%s3 + $0x8] sm:$0xff]
          %v2857 = vld [vmem:[%s3 + $0x10] sm:$0xff]
          %v2858 = vld [vmem:[%s3 + $0x18] sm:$0xff]
          %2860 = vset.pattern.permute.xlu0 0
          %2861 = vperm.xlu0 %2860, %v2855
          %v2862 = vpop.permute.xlu0 %2861
          %2865 = vset.pattern.permute.xlu0 0
          %2866 = vperm.xlu0 %2865, %v2856
          %v2867 = vpop.permute.xlu0 %2866
          %2870 = vset.pattern.permute.xlu0 0
          %2871 = vperm.xlu0 %2870, %v2857
          %v2872 = vpop.permute.xlu0 %2871
          %2875 = vset.pattern.permute.xlu0 0
          %2876 = vperm.xlu0 %2875, %v2858
          %v2877 = vpop.permute.xlu0 %2876
          %v2883 = vrot.slane %v2848, 7
          %vm2884 = vcmask 1041409
          %v2885 = vsel %vm2884, %v2883, %v2847
          %v2886 = vrot.slane %v2849, 6
          %vm2887 = vcmask 1042434
          %v2888 = vsel %vm2887, %v2886, %v2885
          %v2889 = vrot.slane %v2850, 5
          %vm2890 = vcmask 1043459
          %v2891 = vsel %vm2890, %v2889, %v2888
          %vm2892 = vcmask 31744
          %v2894 = vsel %vm2892, %v2851, 0
          %v2897 = vsel %vm2892, %v2852, 0
          %v2900 = vsel %vm2892, %v2853, 0
          %v2903 = vsel %vm2892, %v2854, 0
          %vm2905 = vcmask 1043456
          %v2906 = vsel %vm2905, %v2891, 0
          %2908 = vmatpush.msra.mxu0 0.0
          %2909 = vmatpush.msra.mxu0 0.0
          %2910 = vmatpush.msra.mxu0 0.0
          %2911 = vmatpush.msra.mxu0 0.0
          %2912 = vmatpush.msra.mxu0 0.0
          %2913 = vmatpush.msra.mxu0 0.0
          %2914 = vmatpush.msra.mxu0 0.0
          %2915 = vmatpush.msra.mxu0 0.0
          %2916 = vmatpush.msra.mxu0 0.0
          %2917 = vmatpush.msra.mxu0 0.0
          %2918 = vmatpush.msra.mxu0 0.0
          %2919 = vmatpush.msra.mxu0 0.0
          %2920 = vmatpush.msra.mxu0 0.0
          %2921 = vmatpush.msra.mxu0 0.0
          %2922 = vmatpush.msra.mxu0 0.0
          %2923 = vmatpush.msra.mxu0 %v2906
          %2924 = vmatmul.f32.gmra.mxu0 %v2894
          %v2925 = vpop.f32.mrf.mxu0
          %v2926 = vadd.f32 %v2862, %v2925
          %2927 = vmatmul.f32.gmra.mxu0 %v2897
          %v2928 = vpop.f32.mrf.mxu0
          %v2929 = vadd.f32 %v2867, %v2928
          %2930 = vmatmul.f32.gmra.mxu0 %v2900
          %v2931 = vpop.f32.mrf.mxu0
          %v2932 = vadd.f32 %v2872, %v2931
          %2933 = vmatmul.f32.gmra.mxu0 %v2903
          %v2934 = vpop.f32.mrf.mxu0
          %v2935 = vadd.f32 %v2877, %v2934
          %2936 = vdwg.mxu0
          %v2937 = vxor.u32 %v2926, 2147483648
          %v2938 = vxor.u32 %v2929, 2147483648
          %v2939 = vxor.u32 %v2932, 2147483648
          %v2940 = vxor.u32 %v2935, 2147483648
          %v2941 = vmul.f32 %v2937, 1.442695
          %v2942 = vpow.pop %v2941
          %v2943 = vmul.f32 %v2938, 1.442695
          %v2944 = vpow.pop %v2943
          %v2945 = vmul.f32 %v2939, 1.442695
          %v2946 = vpow.pop %v2945
          %v2947 = vmul.f32 %v2940, 1.442695
          %v2948 = vpow.pop %v2947
          %v2949 = vadd.f32 %v2942, 1.0
          %v2950 = vadd.f32 %v2944, 1.0
          %v2951 = vadd.f32 %v2946, 1.0
          %v2952 = vadd.f32 %v2948, 1.0
          %v2953 = vrcp.pop %v2949
          %v2954 = vmul.f32 %v2949, %v2953
          %v2955 = vsub.f32 1.0, %v2954
          %v2956 = vmul.f32 %v2953, %v2955
          %v2957 = vadd.f32 %v2953, %v2956
          %vm2958 = vweird.f32 %v2949
          %vm2959 = vweird.f32 %v2953
          %vm2960 = vmor %vm2958, %vm2959
          %v2961 = vsel %vm2960, %v2953, %v2957
          %v2962 = vand.u32 2147483647, %v2949
          %vm2963 = vcmp.eq.f32.partialorder %v2962, 8.507059e+37
          %v2964 = vand.u32 %v2949, 2147483648
          %v2965 = vor.u32 1.1754944e-38, %v2964
          %v2966 = vsel %vm2963, %v2965, %v2961
          %v2967 = vmul.f32 1.0, %v2966
          %v2968 = vrcp.pop %v2950
          %v2969 = vmul.f32 %v2950, %v2968
          %v2970 = vsub.f32 1.0, %v2969
          %v2971 = vmul.f32 %v2968, %v2970
          %v2972 = vadd.f32 %v2968, %v2971
          %vm2973 = vweird.f32 %v2950
          %vm2974 = vweird.f32 %v2968
          %vm2975 = vmor %vm2973, %vm2974
          %v2976 = vsel %vm2975, %v2968, %v2972
          %v2977 = vand.u32 2147483647, %v2950
          %vm2978 = vcmp.eq.f32.partialorder %v2977, 8.507059e+37
          %v2979 = vand.u32 %v2950, 2147483648
          %v2980 = vor.u32 1.1754944e-38, %v2979
          %v2981 = vsel %vm2978, %v2980, %v2976
          %v2982 = vmul.f32 1.0, %v2981
          %v2983 = vrcp.pop %v2951
          %v2984 = vmul.f32 %v2951, %v2983
          %v2985 = vsub.f32 1.0, %v2984
          %v2986 = vmul.f32 %v2983, %v2985
          %v2987 = vadd.f32 %v2983, %v2986
          %vm2988 = vweird.f32 %v2951
          %vm2989 = vweird.f32 %v2983
          %vm2990 = vmor %vm2988, %vm2989
          %v2991 = vsel %vm2990, %v2983, %v2987
          %v2992 = vand.u32 2147483647, %v2951
          %vm2993 = vcmp.eq.f32.partialorder %v2992, 8.507059e+37
          %v2994 = vand.u32 %v2951, 2147483648
          %v2995 = vor.u32 1.1754944e-38, %v2994
          %v2996 = vsel %vm2993, %v2995, %v2991
          %v2997 = vmul.f32 1.0, %v2996
          %v2998 = vrcp.pop %v2952
          %v2999 = vmul.f32 %v2952, %v2998
          %v3000 = vsub.f32 1.0, %v2999
          %v3001 = vmul.f32 %v2998, %v3000
          %v3002 = vadd.f32 %v2998, %v3001
          %vm3003 = vweird.f32 %v2952
          %vm3004 = vweird.f32 %v2998
          %vm3005 = vmor %vm3003, %vm3004
          %v3006 = vsel %vm3005, %v2998, %v3002
          %v3007 = vand.u32 2147483647, %v2952
          %vm3008 = vcmp.eq.f32.partialorder %v3007, 8.507059e+37
          %v3009 = vand.u32 %v2952, 2147483648
          %v3010 = vor.u32 1.1754944e-38, %v3009
          %v3011 = vsel %vm3008, %v3010, %v3006
          %v3012 = vmul.f32 1.0, %v3011
          %v3013 = vmul.f32 %v2926, %v2967
          %v3014 = vmul.f32 %v2929, %v2982
          %v3015 = vmul.f32 %v2932, %v2997
          %v3016 = vmul.f32 %v2935, %v3012
          %v3017 = vld [vmem:[#allocation8] sm:$0xf]
          %v3018 = vld [vmem:[%s5] sm:$0xf]
          %3020 = vset.pattern.permute.xlu0 0
          %3021 = vperm.xlu0 %3020, %v3018
          %v3022 = vpop.permute.xlu0 %3021
          %vm3024 = vcmask 261120
          %v3026 = vsel %vm3024, %v3017, 0
          %3028 = vmatpush.msra.mxu0 0.0
          %3029 = vmatpush.msra.mxu0 0.0
          %3030 = vmatpush.msra.mxu0 0.0
          %3031 = vmatpush.msra.mxu0 0.0
          %3032 = vmatpush.msra.mxu0 0.0
          %3033 = vmatpush.msra.mxu0 0.0
          %3034 = vmatpush.msra.mxu0 0.0
          %3035 = vmatpush.msra.mxu0 0.0
          %3036 = vmatpush.msra.mxu0 0.0
          %3037 = vmatpush.msra.mxu0 0.0
          %3038 = vmatpush.msra.mxu0 0.0
          %3039 = vmatpush.msra.mxu0 0.0
          %3040 = vmatpush.msra.mxu0 %v3016
          %3041 = vmatpush.msra.mxu0 %v3015
          %3042 = vmatpush.msra.mxu0 %v3014
          %3043 = vmatpush.msra.mxu0 %v3013
          %3044 = vmatmul.f32.gmra.mxu0 %v3026
          %v3045 = vpop.f32.mrf.mxu0
          %v3046 = vadd.f32 %v3022, %v3045
          %3047 = vdwg.mxu0
          %v3048 = vpack.c.bf16 %v3046, %v3046
          %3049 = vst [vmem:[%s316] sm:$0x3] %v3048
          %v3050 = vld [vmem:[%s2] sm:$0xff]
          %v3051 = vld [vmem:[%s2 + $0x8] sm:$0xff]
          %v3052 = vld [vmem:[%s2 + $0x10] sm:$0xff]
          %v3053 = vld [vmem:[%s2 + $0x18] sm:$0xff]
          %v3054 = vld [vmem:[%s3] sm:$0xff]
          %v3055 = vld [vmem:[%s3 + $0x8] sm:$0xff]
          %v3056 = vld [vmem:[%s3 + $0x10] sm:$0xff]
          %v3057 = vld [vmem:[%s3 + $0x18] sm:$0xff]
          %3059 = vset.pattern.permute.xlu0 0
          %3060 = vperm.xlu0 %3059, %v3054
          %v3061 = vpop.permute.xlu0 %3060
          %3064 = vset.pattern.permute.xlu0 0
          %3065 = vperm.xlu0 %3064, %v3055
          %v3066 = vpop.permute.xlu0 %3065
          %3069 = vset.pattern.permute.xlu0 0
          %3070 = vperm.xlu0 %3069, %v3056
          %v3071 = vpop.permute.xlu0 %3070
          %3074 = vset.pattern.permute.xlu0 0
          %3075 = vperm.xlu0 %3074, %v3057
          %v3076 = vpop.permute.xlu0 %3075
          %v3078 = vrot.slane %v2847, 1
          %v3079 = vsel %vm2884, %v2848, %v3078
          %v3080 = vrot.slane %v2849, 7
          %v3081 = vsel %vm2887, %v3080, %v3079
          %v3082 = vrot.slane %v2850, 6
          %v3083 = vsel %vm2890, %v3082, %v3081
          %v3085 = vsel %vm2892, %v3050, 0
          %v3088 = vsel %vm2892, %v3051, 0
          %v3091 = vsel %vm2892, %v3052, 0
          %v3094 = vsel %vm2892, %v3053, 0
          %v3096 = vsel %vm2905, %v3083, 0
          %3098 = vmatpush.msra.mxu0 0.0
          %3099 = vmatpush.msra.mxu0 0.0
          %3100 = vmatpush.msra.mxu0 0.0
          %3101 = vmatpush.msra.mxu0 0.0
          %3102 = vmatpush.msra.mxu0 0.0
          %3103 = vmatpush.msra.mxu0 0.0
          %3104 = vmatpush.msra.mxu0 0.0
          %3105 = vmatpush.msra.mxu0 0.0
          %3106 = vmatpush.msra.mxu0 0.0
          %3107 = vmatpush.msra.mxu0 0.0
          %3108 = vmatpush.msra.mxu0 0.0
          %3109 = vmatpush.msra.mxu0 0.0
          %3110 = vmatpush.msra.mxu0 0.0
          %3111 = vmatpush.msra.mxu0 0.0
          %3112 = vmatpush.msra.mxu0 0.0
          %3113 = vmatpush.msra.mxu0 %v3096
          %3114 = vmatmul.f32.gmra.mxu0 %v3085
          %v3115 = vpop.f32.mrf.mxu0
          %v3116 = vadd.f32 %v3061, %v3115
          %3117 = vmatmul.f32.gmra.mxu0 %v3088
          %v3118 = vpop.f32.mrf.mxu0
          %v3119 = vadd.f32 %v3066, %v3118
          %3120 = vmatmul.f32.gmra.mxu0 %v3091
          %v3121 = vpop.f32.mrf.mxu0
          %v3122 = vadd.f32 %v3071, %v3121
          %3123 = vmatmul.f32.gmra.mxu0 %v3094
          %v3124 = vpop.f32.mrf.mxu0
          %v3125 = vadd.f32 %v3076, %v3124
          %3126 = vdwg.mxu0
          %v3127 = vxor.u32 %v3116, 2147483648
          %v3128 = vxor.u32 %v3119, 2147483648
          %v3129 = vxor.u32 %v3122, 2147483648
          %v3130 = vxor.u32 %v3125, 2147483648
          %v3131 = vmul.f32 %v3127, 1.442695
          %v3132 = vpow.pop %v3131
          %v3133 = vmul.f32 %v3128, 1.442695
          %v3134 = vpow.pop %v3133
          %v3135 = vmul.f32 %v3129, 1.442695
          %v3136 = vpow.pop %v3135
          %v3137 = vmul.f32 %v3130, 1.442695
          %v3138 = vpow.pop %v3137
          %v3139 = vadd.f32 %v3132, 1.0
          %v3140 = vadd.f32 %v3134, 1.0
          %v3141 = vadd.f32 %v3136, 1.0
          %v3142 = vadd.f32 %v3138, 1.0
          %v3143 = vrcp.pop %v3139
          %v3144 = vmul.f32 %v3139, %v3143
          %v3145 = vsub.f32 1.0, %v3144
          %v3146 = vmul.f32 %v3143, %v3145
          %v3147 = vadd.f32 %v3143, %v3146
          %vm3148 = vweird.f32 %v3139
          %vm3149 = vweird.f32 %v3143
          %vm3150 = vmor %vm3148, %vm3149
          %v3151 = vsel %vm3150, %v3143, %v3147
          %v3152 = vand.u32 2147483647, %v3139
          %vm3153 = vcmp.eq.f32.partialorder %v3152, 8.507059e+37
          %v3154 = vand.u32 %v3139, 2147483648
          %v3155 = vor.u32 1.1754944e-38, %v3154
          %v3156 = vsel %vm3153, %v3155, %v3151
          %v3157 = vmul.f32 1.0, %v3156
          %v3158 = vrcp.pop %v3140
          %v3159 = vmul.f32 %v3140, %v3158
          %v3160 = vsub.f32 1.0, %v3159
          %v3161 = vmul.f32 %v3158, %v3160
          %v3162 = vadd.f32 %v3158, %v3161
          %vm3163 = vweird.f32 %v3140
          %vm3164 = vweird.f32 %v3158
          %vm3165 = vmor %vm3163, %vm3164
          %v3166 = vsel %vm3165, %v3158, %v3162
          %v3167 = vand.u32 2147483647, %v3140
          %vm3168 = vcmp.eq.f32.partialorder %v3167, 8.507059e+37
          %v3169 = vand.u32 %v3140, 2147483648
          %v3170 = vor.u32 1.1754944e-38, %v3169
          %v3171 = vsel %vm3168, %v3170, %v3166
          %v3172 = vmul.f32 1.0, %v3171
          %v3173 = vrcp.pop %v3141
          %v3174 = vmul.f32 %v3141, %v3173
          %v3175 = vsub.f32 1.0, %v3174
          %v3176 = vmul.f32 %v3173, %v3175
          %v3177 = vadd.f32 %v3173, %v3176
          %vm3178 = vweird.f32 %v3141
          %vm3179 = vweird.f32 %v3173
          %vm3180 = vmor %vm3178, %vm3179
          %v3181 = vsel %vm3180, %v3173, %v3177
          %v3182 = vand.u32 2147483647, %v3141
          %vm3183 = vcmp.eq.f32.partialorder %v3182, 8.507059e+37
          %v3184 = vand.u32 %v3141, 2147483648
          %v3185 = vor.u32 1.1754944e-38, %v3184
          %v3186 = vsel %vm3183, %v3185, %v3181
          %v3187 = vmul.f32 1.0, %v3186
          %v3188 = vrcp.pop %v3142
          %v3189 = vmul.f32 %v3142, %v3188
          %v3190 = vsub.f32 1.0, %v3189
          %v3191 = vmul.f32 %v3188, %v3190
          %v3192 = vadd.f32 %v3188, %v3191
          %vm3193 = vweird.f32 %v3142
          %vm3194 = vweird.f32 %v3188
          %vm3195 = vmor %vm3193, %vm3194
          %v3196 = vsel %vm3195, %v3188, %v3192
          %v3197 = vand.u32 2147483647, %v3142
          %vm3198 = vcmp.eq.f32.partialorder %v3197, 8.507059e+37
          %v3199 = vand.u32 %v3142, 2147483648
          %v3200 = vor.u32 1.1754944e-38, %v3199
          %v3201 = vsel %vm3198, %v3200, %v3196
          %v3202 = vmul.f32 1.0, %v3201
          %v3203 = vmul.f32 %v3116, %v3157
          %v3204 = vmul.f32 %v3119, %v3172
          %v3205 = vmul.f32 %v3122, %v3187
          %v3206 = vmul.f32 %v3125, %v3202
          %v3207 = vld [vmem:[#allocation8] sm:$0xf]
          %v3208 = vld [vmem:[%s5] sm:$0xf]
          %3210 = vset.pattern.permute.xlu0 0
          %3211 = vperm.xlu0 %3210, %v3208
          %v3212 = vpop.permute.xlu0 %3211
          %v3215 = vsel %vm3024, %v3207, 0
          %3217 = vmatpush.msra.mxu0 0.0
          %3218 = vmatpush.msra.mxu0 0.0
          %3219 = vmatpush.msra.mxu0 0.0
          %3220 = vmatpush.msra.mxu0 0.0
          %3221 = vmatpush.msra.mxu0 0.0
          %3222 = vmatpush.msra.mxu0 0.0
          %3223 = vmatpush.msra.mxu0 0.0
          %3224 = vmatpush.msra.mxu0 0.0
          %3225 = vmatpush.msra.mxu0 0.0
          %3226 = vmatpush.msra.mxu0 0.0
          %3227 = vmatpush.msra.mxu0 0.0
          %3228 = vmatpush.msra.mxu0 0.0
          %3229 = vmatpush.msra.mxu0 %v3206
          %3230 = vmatpush.msra.mxu0 %v3205
          %3231 = vmatpush.msra.mxu0 %v3204
          %3232 = vmatpush.msra.mxu0 %v3203
          %3233 = vmatmul.f32.gmra.mxu0 %v3215
          %v3234 = vpop.f32.mrf.mxu0
          %v3235 = vadd.f32 %v3212, %v3234
          %3236 = vdwg.mxu0
          %v3237 = vpack.c.bf16 %v3235, %v3235
          %s3238 = scalar_lea.vmem %s316, 2 [#allocation9]
          %3239 = vst [vmem:[%s3238] sm:$0x3] %v3237
        $region64: #{tpu_custom_call.1} parent=43 // pred_fallthru
          _
        %s3240 = sand.u32 %s177, 1
        %s3241 = scalar_lea.sflag [#allocation5], %s3240
        %s3242 = sand.u32 %s177, 1
        %s3243 = smul.addr %s3242, 4
        %s3244 = scalar_lea.vmem [#allocation9], %s3243
        // Predicated region
        $region65: #{tpu_custom_call.1} parent=43 // pred_check
          %p3245 = pneg %p187
        $region66: #{tpu_custom_call.1} parent=43 // pred_check_branch
          %3247 = sbr.rel (%p3245) target = $region68
        $region67: #{tpu_custom_call.1} parent=43 // pred_region
          %3249 = vsyncadd %s3241, 0
          %s3250 = smul.addr %s28, 2
          %s3251 = scalar_lea.hbm %s6, %s3250
          %s3252 = sshll.u32 %s3244, 4
          %s3253 = int_to_ptr.vmem [resolvable:$true] %s3252
          %s3254 = sshll.u32 %s3251, 4
          %s3255 = int_to_ptr.hbm [resolvable:$true] %s3254
          %3260 = dma.vmem_to_hbm [thread:$0]  %s3253, 64, %s3255, %s3241, 32, 64, 2
        $region68: #{tpu_custom_call.1} parent=43 // pred_fallthru
          _
      $region44: #{tpu_custom_call.1} parent=5 // pred_fallthru
        _
      %p3261 = scmp.le.s32.totalorder 2, %s19
      // Predicated region
      $region69: #{tpu_custom_call.1} parent=5 // pred_check
        %p3262 = pneg %p3261
      $region70: #{tpu_custom_call.1} parent=5 // pred_check_branch
        %3264 = sbr.rel (%p3262) target = $region72
      $region71: #{tpu_custom_call.1} parent=5 // pred_region
        %s3265 = ssub.s32 %s19, 2
        // Predicated region
        $region73: #{tpu_custom_call.1} parent=71 // pred_check
          %p3266 = pneg %p193
        $region74: #{tpu_custom_call.1} parent=71 // pred_check_branch
          %3268 = sbr.rel (%p3266) target = $region76
        $region75: #{tpu_custom_call.1} parent=71 // pred_region
          %s3269 = sand.u32 %s178, 1
          %s3270 = scalar_lea.sflag [#allocation5], %s3269
          %s3271 = sand.u32 %s178, 1
          %s3272 = smul.addr %s3271, 4
          %s3273 = scalar_lea.vmem [#allocation9], %s3272
          %3275 = dma.done %s3270, 64
        $region76: #{tpu_custom_call.1} parent=71 // pred_fallthru
          _
      $region72: #{tpu_custom_call.1} parent=5 // pred_fallthru
        _
    $region6: #{tpu_custom_call.1} parent=1 // loop_footer
      %s23 = sadd.s32 1, %s19
    $region7: #{tpu_custom_call.1} parent=1 // loop_footer_branch
      %18 = sbr.rel target = $region3
    $region8: #{tpu_custom_call.1} parent=1 // loop_exit
      _
    %3276 = vsyncpa [#allocation4], 1
    %s3277 = scalar_lea.sflag [#allocation4], 1
    %3278 = vsyncpa %s3277, 1
    %3279 = vsyncpa [#allocation7], 1
    %s3280 = scalar_lea.sflag [#allocation7], 1
    %3281 = vsyncpa %s3280, 1
    %3282 = vsyncpa [#allocation5], 1
    %s3283 = scalar_lea.sflag [#allocation5], 1
    %3284 = vsyncpa %s3283, 1

</llo_original>
